<compile_context>
chip_gen: v5e
topology: v5e:2x2
jax: 0.10.0
libtpu: 0.0.40
codegen_flags: <defaults>
</compile_context>

<pallas_src>
import jax
import jax.numpy as jnp
from jax.experimental import pallas as pl
from jax.experimental.pallas import tpu as pltpu


# --------------------------------------------------------------------------- kernel
def _vq_kernel(x_ref, w_in_ref, b_in_ref, c_n_ref, c_hsq_ref, w_comb_ref, b_out_ref,
               y_ref, idx_ref,
               e_n_ref, best_ref, run_idx_ref, y_acc_ref):
    """One (time-tile, batch, K-chunk) grid step, channel-major.

    x_ref      : (1, Din, Tt)   input slab (NCT layout), constant across k
    w_in_ref   : (Dc, Din)      in_proj weight (weight-norm already applied)
    b_in_ref   : (Dc, 1)        in_proj bias
    c_n_ref    : (Kc, Dc)       L2-normalized codebook chunk (distance matmul)
    c_hsq_ref  : (Kc, 1)        0.5 * ||c_n||^2 chunk (keeps the zero-row edge case)
    w_comb_ref : (Din, Kc)      bf16 fused  w_out @ codebook.T  chunk
    b_out_ref  : (Din, 1)       out_proj bias
    y_ref      : (1, Din, Tt)   output slab (written at the last K-chunk)
    idx_ref    : (1, 1, Tt)     codebook indices (int32, lane-dense)
    scratch    : e_n (Dc,Tt) f32, best (1,Tt) f32, run_idx (1,Tt) i32, y_acc (Din,Tt) f32
    """
    k = pl.program_id(2)
    kc = c_n_ref.shape[0]

    @pl.when(k == 0)
    def _():
        # in_proj (1x1 Conv1d == channel-major matmul) + F.normalize, hoisted across K.
        x = x_ref[0]                                                        # (Din, Tt)
        z_e = jnp.dot(w_in_ref[...], x,
                      preferred_element_type=jnp.float32) + b_in_ref[...]   # (Dc, Tt)
        ss = jnp.sum(z_e * z_e, axis=0, keepdims=True)                      # (1, Tt)
        # eps=1e-12 on the norm  <=>  clamp the sum of squares at 1e-24.
        e_n_ref[...] = z_e * jax.lax.rsqrt(jnp.maximum(ss, 1e-24))          # (Dc, Tt)

    # score_k = e_n . c_n_k - 0.5*||c_n_k||^2 ; argmin(dist) == argmax(score).
    # Kept in f32 so indices match the f32 reference exactly (near-tie safety).
    score = jnp.dot(c_n_ref[...], e_n_ref[...],
                    preferred_element_type=jnp.float32) - c_hsq_ref[...]    # (Kc, Tt)
    chunk_best = jnp.max(score, axis=0, keepdims=True)                      # (1, Tt)
    iota = jax.lax.broadcasted_iota(jnp.int32, score.shape, 0)              # (Kc, Tt)
    # First index achieving the chunk max (torch.max tie-break).  NOTE: an all-NaN score
    # column would give local_idx == kc and an all-zero one-hot; harmless for finite data.
    local_idx = jnp.min(jnp.where(score == chunk_best, iota, kc),
                        axis=0, keepdims=True)                              # (1, Tt)
    global_idx = local_idx + k * kc                                         # (1, Tt)
    # Strict one-hot built from the resolved index: exactly one 1 per token, even on ties.
    onehot = (iota == local_idx).astype(jnp.bfloat16)                       # (Kc, Tt)

    # Fused gather + out_proj candidate for this chunk's winner (bf16 MXU, f32 accumulate).
    y_chunk = jnp.dot(w_comb_ref[...], onehot,
                      preferred_element_type=jnp.float32)                   # (Din, Tt)

    @pl.when(k == 0)
    def _():
        best_ref[...] = chunk_best
        run_idx_ref[...] = global_idx
        y_acc_ref[...] = y_chunk

    @pl.when(k > 0)
    def _():
        # Strict '>' keeps the earlier chunk on exact ties -> global first-index argmax.
        take_new = chunk_best > best_ref[...]                               # (1, Tt)
        y_acc_ref[...] = jnp.where(take_new, y_chunk, y_acc_ref[...])
        run_idx_ref[...] = jnp.where(take_new, global_idx, run_idx_ref[...])
        best_ref[...] = jnp.maximum(chunk_best, best_ref[...])

    @pl.when(k == pl.num_programs(2) - 1)
    def _():
        # Straight-through estimator: forward value of z_e + (z_q - z_e).detach() is z_q,
        # so the module's forward output is exactly out_proj(codebook[idx]).
        y_ref[0] = (y_acc_ref[...] + b_out_ref[...]).astype(y_ref.dtype)
        idx_ref[0] = run_idx_ref[...]


# --------------------------------------------------------------------------- sizing
def _vmem_capacity_bytes() -> int:
    # v5e / v6e have 128 MiB of VMEM per TensorCore, v7x has 64 MiB.
    try:
        return int(pltpu.get_tpu_info().vmem_capacity_bytes)
    except Exception:
        return 64 * 1024 * 1024   # conservative (v7x-sized) fallback


def _pick_tile_t(T: int, B: int, big_vmem: bool) -> int:
    cap = 1024 if big_vmem else 512          # v5e/v6e vs v7x time-tile cap
    tile = T
    if T > cap:
        t = cap
        tile = None
        while t >= 128:
            if T % t == 0:
                tile = t
                break
            t -= 128
        if tile is None:
            tile = T                          # no 128-multiple divisor; use full-T blocks
    # Keep >= 2 parallel grid steps so both v7x TensorCores get work.
    if B * (T // tile) < 2 and T % 2 == 0 and (T // 2) % 128 == 0:
        tile = T // 2
    return tile


# --------------------------------------------------------------------------- wrapper
def vector_quantize_pallas(z, w_in, b_in, codebook, w_out, b_out, *,
                           tile_t=None, tile_k=None, vmem_limit_bytes=None):
    """z: (B, Din, T) NCT  ->  (out: (B, Din, T) float32, indices: (B, T) int32)."""
    B, Din, T = z.shape
    K, Dc = codebook.shape

    vmem_cap = _vmem_capacity_bytes()
    big_vmem = vmem_cap >= 100 * 1024 * 1024
    if tile_t is None:
        tile_t = _pick_tile_t(T, B, big_vmem)
    assert T % tile_t == 0, "T must be divisible by tile_t"
    assert tile_t == T or tile_t % 128 == 0, "tile_t must be a multiple of 128 or full T"

    if tile_k is None:
        # Chunk the codebook so (tile_k, tile_t) temporaries stay small at production K.
        tile_k = 256 if (K > 256 and K % 256 == 0) else K
    assert K % tile_k == 0, "K must be divisible by tile_k"
    assert tile_k == K or tile_k % 128 == 0, "tile_k must be a multiple of 128 or full K"

    if vmem_limit_bytes is None:
        # ~96 MiB on 128-MiB parts (v5e/v6e), ~48 MiB on 64-MiB parts (v7x).
        vmem_limit_bytes = (96 if big_vmem else 48) * 1024 * 1024

    f32 = jnp.float32
    z = z.astype(f32)
    w_in_m = w_in.astype(f32)                                    # (Dc, Din)
    b_in_c = b_in.reshape(Dc, 1).astype(f32)
    cb = codebook.astype(f32)
    # Grid-invariant codebook normalization, hoisted out of the per-tile body.
    c_norm = jnp.sqrt(jnp.sum(cb * cb, axis=1, keepdims=True))
    c_n = cb / jnp.maximum(c_norm, 1e-12)                        # (K, Dc)
    c_hsq = 0.5 * jnp.sum(c_n * c_n, axis=1, keepdims=True)      # (K, 1)
    # Fused out_proj o codebook-gather:  y = (w_out @ codebook.T)[:, idx] + b_out.
    w_comb = jnp.dot(w_out.astype(f32), cb.T).astype(jnp.bfloat16)   # (Din, K), bf16 MXU
    b_out_c = b_out.reshape(Din, 1).astype(f32)

    grid = (T // tile_t, B, K // tile_k)

    y, idx = pl.pallas_call(
        _vq_kernel,
        out_shape=(
            jax.ShapeDtypeStruct((B, Din, T), jnp.float32),
            jax.ShapeDtypeStruct((B, 1, T), jnp.int32),
        ),
        grid=grid,
        in_specs=[
            pl.BlockSpec((1, Din, tile_t), lambda t, b, k: (b, 0, t)),   # x
            pl.BlockSpec((Dc, Din), lambda t, b, k: (0, 0)),             # w_in
            pl.BlockSpec((Dc, 1), lambda t, b, k: (0, 0)),               # b_in
            pl.BlockSpec((tile_k, Dc), lambda t, b, k: (k, 0)),          # c_n chunk
            pl.BlockSpec((tile_k, 1), lambda t, b, k: (k, 0)),           # c_hsq chunk
            pl.BlockSpec((Din, tile_k), lambda t, b, k: (0, k)),         # W_comb chunk
            pl.BlockSpec((Din, 1), lambda t, b, k: (0, 0)),              # b_out
        ],
        out_specs=(
            pl.BlockSpec((1, Din, tile_t), lambda t, b, k: (b, 0, t)),   # y (acc over k)
            pl.BlockSpec((1, 1, tile_t), lambda t, b, k: (b, 0, t)),     # idx (lane-dense)
        ),
        scratch_shapes=[
            pltpu.VMEM((Dc, tile_t), jnp.float32),    # e_n (hoisted in_proj+normalize)
            pltpu.VMEM((1, tile_t), jnp.float32),     # running best score
            pltpu.VMEM((1, tile_t), jnp.int32),       # running argmax index
            pltpu.VMEM((Din, tile_t), jnp.float32),   # running candidate output
        ],
        compiler_params=pltpu.CompilerParams(
            dimension_semantics=("parallel", "parallel", "arbitrary"),
            vmem_limit_bytes=vmem_limit_bytes,
        ),
    )(z, w_in_m, b_in_c, c_n, c_hsq, w_comb, b_out_c)

    return y, idx.reshape(B, T)


# ----------------- parameter setup (deterministic, weight-norm applied) -----
def make_params(key, input_dim, codebook_size, codebook_dim):
    ks = jax.random.split(key, 7)
    # WNConv1d(in_proj): v (Dc, Din, 1), g (Dc, 1, 1), bias (Dc,)
    v_in = jax.random.normal(ks[0], (codebook_dim, input_dim, 1), jnp.float32) * 0.1
    g_in = jax.random.normal(ks[1], (codebook_dim, 1, 1), jnp.float32) * 0.5 + 1.0
    b_in = jax.random.normal(ks[2], (codebook_dim,), jnp.float32) * 0.1
    # WNConv1d(out_proj): v (Din, Dc, 1), g (Din, 1, 1), bias (Din,)
    v_out = jax.random.normal(ks[3], (input_dim, codebook_dim, 1), jnp.float32) * 0.1
    g_out = jax.random.normal(ks[4], (input_dim, 1, 1), jnp.float32) * 0.5 + 1.0
    b_out = jax.random.normal(ks[5], (input_dim,), jnp.float32) * 0.1
    # Embedding codebook (K, Dc)
    codebook = jax.random.normal(ks[6], (codebook_size, codebook_dim), jnp.float32)

    def wn(v, g):  # weight_norm: norm over dims (1, 2) per output channel
        norm = jnp.sqrt(jnp.sum(v * v, axis=(1, 2), keepdims=True))
        return (g * v / norm)[..., 0]   # squeeze kernel_size=1 -> (out, in)

    return wn(v_in, g_in), b_in, codebook, wn(v_out, g_out), b_out


# ----------------- pure-JAX reference (mirrors the PyTorch forward) ---------
def reference_forward(z, w_in, b_in, codebook, w_out, b_out):
    B, Din, T = z.shape
    Dc = codebook.shape[1]
    z_e = jnp.einsum('oc,bct->bot', w_in, z) + b_in[None, :, None]
    enc = jnp.transpose(z_e, (0, 2, 1)).reshape(B * T, Dc)
    e_n = enc / jnp.maximum(jnp.linalg.norm(enc, axis=1, keepdims=True), 1e-12)
    c_n = codebook / jnp.maximum(jnp.linalg.norm(codebook, axis=1, keepdims=True), 1e-12)
    dist = (jnp.sum(e_n ** 2, axis=1, keepdims=True)
            - 2 * e_n @ c_n.T
            + jnp.sum(c_n ** 2, axis=1, keepdims=True).T)
    indices = jnp.argmax(-dist, axis=1).reshape(B, T)
    z_q = jnp.transpose(codebook[indices], (0, 2, 1))     # (B, Dc, T)
    out = jnp.einsum('oc,bct->bot', w_out, z_q) + b_out[None, :, None]
    return out, indices.astype(jnp.int32)


def _reference_scores(z, w_in, b_in, codebook):
    """(B*T, K) normalized-dot scores (argmax over K == reference argmin distance)."""
    B, Din, T = z.shape
    Dc = codebook.shape[1]
    z_e = jnp.einsum('oc,bct->bot', w_in, z) + b_in[None, :, None]
    enc = jnp.transpose(z_e, (0, 2, 1)).reshape(B * T, Dc)
    e_n = enc / jnp.maximum(jnp.linalg.norm(enc, axis=1, keepdims=True), 1e-12)
    c_n = codebook / jnp.maximum(jnp.linalg.norm(codebook, axis=1, keepdims=True), 1e-12)
    return e_n @ c_n.T - 0.5 * jnp.sum(c_n * c_n, axis=1)[None, :]


if __name__ == "__main__":
    B, input_dim, T = 2, 64, 256
    codebook_size, codebook_dim = 256, 32

    key = jax.random.PRNGKey(0)
    kp, kz = jax.random.split(key)
    w_in, b_in, codebook, w_out, b_out = make_params(
        kp, input_dim, codebook_size, codebook_dim)
    z = jax.random.normal(kz, (B, input_dim, T), jnp.float32)

    # tile_t=128, tile_k=128 -> grid (2, 2, 2): exercises pipelining, megacore sharding
    # and the chunked running-argmax merge across K-chunks.
    out, indices = vector_quantize_pallas(
        z, w_in, b_in, codebook, w_out, b_out, tile_t=128, tile_k=128)
    jax.block_until_ready(out)
    jax.block_until_ready(indices)

    out_ref, idx_ref = reference_forward(z, w_in, b_in, codebook, w_out, b_out)
    assert out.shape == (B, input_dim, T) and indices.shape == (B, T)

    # (1) Exact check of the fused bf16 gather+out_proj path at the kernel's own indices.
    w_comb_bf = (jnp.dot(w_out.astype(jnp.float32), codebook.astype(jnp.float32).T)
                 .astype(jnp.bfloat16).astype(jnp.float32))                  # (Din, K)
    out_fused = jnp.transpose(w_comb_bf[:, indices], (1, 0, 2)) + b_out[None, :, None]
    assert bool(jnp.allclose(out, out_fused, atol=1e-5, rtol=1e-5)), "fused path mismatch"

    # (2) Index / output parity with the f32 reference (bf16 W_comb => ~0.4% value tol).
    if bool(jnp.all(indices == idx_ref)):
        assert bool(jnp.allclose(out, out_ref, atol=2e-2, rtol=2e-2)), "output mismatch"
    else:
        # Fallback only for genuine f32 near-ties: the kernel's chosen code must still be
        # optimal to within 1e-5 in the reference metric, mismatches must be rare, and
        # outputs must match the reference wherever the indices agree.
        score = _reference_scores(z, w_in, b_in, codebook)                   # (B*T, K)
        fk = indices.reshape(-1)
        fr = idx_ref.reshape(-1)
        s_kern = jnp.take_along_axis(score, fk[:, None], axis=1)[:, 0]
        s_best = jnp.take_along_axis(score, fr[:, None], axis=1)[:, 0]
        assert bool(jnp.all(s_best - s_kern <= 1e-5)), "kernel picked a non-optimal code"
        assert float(jnp.mean(fk == fr)) > 0.999, "too many index mismatches"
        match = (fk == fr).reshape(B, 1, T)
        diff_ok = jnp.abs(out - out_ref) <= (2e-2 + 2e-2 * jnp.abs(out_ref))
        assert bool(jnp.all(jnp.where(match, diff_ok, True))), "output mismatch"

    print("KERNEL_OK")
</pallas_src>

<mosaic_0001>
module attributes {stable_mosaic.version = 11 : i64} {
  func.func @_vq_kernel(%arg0: i32, %arg1: i32, %arg2: i32, %arg3: memref<1x64x128xf32, #tpu.memory_space<vmem>>, %arg4: memref<32x64xf32, #tpu.memory_space<vmem>>, %arg5: memref<32x1xf32, #tpu.memory_space<vmem>>, %arg6: memref<128x32xf32, #tpu.memory_space<vmem>>, %arg7: memref<128x1xf32, #tpu.memory_space<vmem>>, %arg8: memref<64x128xbf16, #tpu.memory_space<vmem>>, %arg9: memref<64x1xf32, #tpu.memory_space<vmem>>, %arg10: memref<1x64x128xf32, #tpu.memory_space<vmem>>, %arg11: memref<1x1x128xi32, #tpu.memory_space<vmem>>, %arg12: memref<32x128xf32, #tpu.memory_space<vmem>>, %arg13: memref<1x128xf32, #tpu.memory_space<vmem>>, %arg14: memref<1x128xi32, #tpu.memory_space<vmem>>, %arg15: memref<64x128xf32, #tpu.memory_space<vmem>>) attributes {dimension_semantics = [#tpu.dimension_semantics<parallel>, #tpu.dimension_semantics<parallel>, #tpu.dimension_semantics<arbitrary>], iteration_bounds = array<i64: 2, 2, 2>, scalar_prefetch = 0 : i64, scratch_operands = 4 : i64, tpu.core_type = #tpu.core_type<tc>, window_params = [{transform_indices = @transform_0, window_bounds = array<i64: 1, 64, 128>}, {pipeline_mode = #tpu.pipeline_mode<synchronous>, transform_indices = @transform_1, window_bounds = array<i64: 32, 64>}, {pipeline_mode = #tpu.pipeline_mode<synchronous>, transform_indices = @transform_2, window_bounds = array<i64: 32, 1>}, {transform_indices = @transform_3, window_bounds = array<i64: 128, 32>}, {transform_indices = @transform_4, window_bounds = array<i64: 128, 1>}, {transform_indices = @transform_5, window_bounds = array<i64: 64, 128>}, {pipeline_mode = #tpu.pipeline_mode<synchronous>, transform_indices = @transform_6, window_bounds = array<i64: 64, 1>}, {transform_indices = @transform_7, window_bounds = array<i64: 1, 64, 128>}, {transform_indices = @transform_8, window_bounds = array<i64: 1, 1, 128>}]} {
    %c0_i32 = arith.constant 0 : i32
    %0 = arith.cmpi eq, %arg2, %c0_i32 : i32
    %1 = arith.extui %0 : i1 to i32
    %c0_i32_0 = arith.constant 0 : i32
    %2 = arith.cmpi ne, %1, %c0_i32_0 : i32
    scf.if %2 {
      %c0_17 = arith.constant 0 : index
      %c0_18 = arith.constant 0 : index
      %c0_19 = arith.constant 0 : index
      %37 = vector.load %arg3[%c0_17, %c0_18, %c0_19] : memref<1x64x128xf32, #tpu.memory_space<vmem>>, vector<1x64x128xf32>
      %38 = vector.shape_cast %37 : vector<1x64x128xf32> to vector<64x128xf32>
      %c0_20 = arith.constant 0 : index
      %c0_21 = arith.constant 0 : index
      %39 = vector.load %arg4[%c0_20, %c0_21] : memref<32x64xf32, #tpu.memory_space<vmem>>, vector<32x64xf32>
      %cst_22 = arith.constant dense<0.000000e+00> : vector<32x128xf32>
      %40 = tpu.matmul %39, %38, %cst_22 {dimension_numbers = #tpu.dot_dimension_numbers<[1], [0], [0], [1], [0, 0, 1, 1], [], []>} : vector<32x64xf32>, vector<64x128xf32>, vector<32x128xf32> -> vector<32x128xf32>
      %c0_23 = arith.constant 0 : index
      %c0_24 = arith.constant 0 : index
      %41 = vector.load %arg5[%c0_23, %c0_24] : memref<32x1xf32, #tpu.memory_space<vmem>>, vector<32x1xf32>
      %42 = vector.broadcast %41 : vector<32x1xf32> to vector<32x128xf32>
      %43 = arith.addf %40, %42 : vector<32x128xf32>
      %44 = arith.mulf %43, %43 : vector<32x128xf32>
      %cst_25 = arith.constant dense<0.000000e+00> : vector<128xf32>
      %45 = vector.multi_reduction <add>, %44, %cst_25 [0] : vector<32x128xf32> to vector<128xf32>
      %46 = vector.shape_cast %45 : vector<128xf32> to vector<1x128xf32>
      %cst_26 = arith.constant 1.000000e-24 : f32
      %47 = vector.broadcast %cst_26 : f32 to vector<1x128xf32>
      %48 = arith.maximumf %46, %47 : vector<1x128xf32>
      %49 = math.rsqrt %48 : vector<1x128xf32>
      %50 = vector.broadcast %49 : vector<1x128xf32> to vector<32x128xf32>
      %51 = arith.mulf %43, %50 : vector<32x128xf32>
      %c0_27 = arith.constant 0 : index
      %c0_28 = arith.constant 0 : index
      %52 = vector.load %arg12[%c0_27, %c0_28] : memref<32x128xf32, #tpu.memory_space<vmem>>, vector<32x128xf32>
      tpu.vector_store %arg12[%c0_27, %c0_28], %51 {strides = array<i32>} : memref<32x128xf32, #tpu.memory_space<vmem>>, vector<32x128xf32>,
    } else {
    }
    %c0 = arith.constant 0 : index
    %c0_1 = arith.constant 0 : index
    %3 = vector.load %arg6[%c0, %c0_1] : memref<128x32xf32, #tpu.memory_space<vmem>>, vector<128x32xf32>
    %c0_2 = arith.constant 0 : index
    %c0_3 = arith.constant 0 : index
    %4 = vector.load %arg12[%c0_2, %c0_3] : memref<32x128xf32, #tpu.memory_space<vmem>>, vector<32x128xf32>
    %cst = arith.constant dense<0.000000e+00> : vector<128x128xf32>
    %5 = tpu.matmul %3, %4, %cst {dimension_numbers = #tpu.dot_dimension_numbers<[1], [0], [0], [1], [0, 0, 1, 1], [], []>} : vector<128x32xf32>, vector<32x128xf32>, vector<128x128xf32> -> vector<128x128xf32>
    %c0_4 = arith.constant 0 : index
    %c0_5 = arith.constant 0 : index
    %6 = vector.load %arg7[%c0_4, %c0_5] : memref<128x1xf32, #tpu.memory_space<vmem>>, vector<128x1xf32>
    %7 = vector.broadcast %6 : vector<128x1xf32> to vector<128x128xf32>
    %8 = arith.subf %5, %7 : vector<128x128xf32>
    %cst_6 = arith.constant dense<0xFF800000> : vector<128xf32>
    %9 = vector.multi_reduction <maximumf>, %8, %cst_6 [0] : vector<128x128xf32> to vector<128xf32>
    %10 = vector.shape_cast %9 : vector<128xf32> to vector<1x128xf32>
    %11 = tpu.iota {dimensions = array<i32: 0>} : vector<128x128xi32>
    %12 = vector.broadcast %10 : vector<1x128xf32> to vector<128x128xf32>
    %13 = arith.cmpf oeq, %8, %12 : vector<128x128xf32>
    %c128_i32 = arith.constant 128 : i32
    %14 = vector.broadcast %c128_i32 : i32 to vector<128x128xi32>
    %15 = arith.select %13, %11, %14 : vector<128x128xi1>, vector<128x128xi32>
    %cst_7 = arith.constant dense<2147483647> : vector<128xi32>
    %16 = vector.multi_reduction <minsi>, %15, %cst_7 [0] : vector<128x128xi32> to vector<128xi32>
    %17 = vector.shape_cast %16 : vector<128xi32> to vector<1x128xi32>
    %c128_i32_8 = arith.constant 128 : i32
    %18 = arith.muli %arg2, %c128_i32_8 : i32
    %19 = vector.broadcast %18 : i32 to vector<1x128xi32>
    %20 = arith.addi %17, %19 : vector<1x128xi32>
    %21 = vector.broadcast %17 : vector<1x128xi32> to vector<128x128xi32>
    %22 = arith.cmpi eq, %11, %21 : vector<128x128xi32>
    %23 = arith.extui %22 : vector<128x128xi1> to vector<128x128xi32>
    %24 = arith.sitofp %23 : vector<128x128xi32> to vector<128x128xf32>
    %25 = arith.truncf %24 : vector<128x128xf32> to vector<128x128xbf16>
    %c0_9 = arith.constant 0 : index
    %c0_10 = arith.constant 0 : index
    %26 = vector.load %arg8[%c0_9, %c0_10] : memref<64x128xbf16, #tpu.memory_space<vmem>>, vector<64x128xbf16>
    %cst_11 = arith.constant dense<0.000000e+00> : vector<64x128xf32>
    %27 = tpu.matmul %26, %25, %cst_11 {dimension_numbers = #tpu.dot_dimension_numbers<[1], [0], [0], [1], [0, 0, 1, 1], [], []>} : vector<64x128xbf16>, vector<128x128xbf16>, vector<64x128xf32> -> vector<64x128xf32>
    %c0_i32_12 = arith.constant 0 : i32
    %28 = arith.cmpi eq, %arg2, %c0_i32_12 : i32
    %29 = arith.extui %28 : i1 to i32
    %c0_i32_13 = arith.constant 0 : i32
    %30 = arith.cmpi ne, %29, %c0_i32_13 : i32
    scf.if %30 {
      %c0_17 = arith.constant 0 : index
      %c0_18 = arith.constant 0 : index
      %37 = vector.load %arg13[%c0_17, %c0_18] : memref<1x128xf32, #tpu.memory_space<vmem>>, vector<1x128xf32>
      tpu.vector_store %arg13[%c0_17, %c0_18], %10 {strides = array<i32>} : memref<1x128xf32, #tpu.memory_space<vmem>>, vector<1x128xf32>,
      %c0_19 = arith.constant 0 : index
      %c0_20 = arith.constant 0 : index
      %38 = vector.load %arg14[%c0_19, %c0_20] : memref<1x128xi32, #tpu.memory_space<vmem>>, vector<1x128xi32>
      tpu.vector_store %arg14[%c0_19, %c0_20], %20 {strides = array<i32>} : memref<1x128xi32, #tpu.memory_space<vmem>>, vector<1x128xi32>,
      %c0_21 = arith.constant 0 : index
      %c0_22 = arith.constant 0 : index
      %39 = vector.load %arg15[%c0_21, %c0_22] : memref<64x128xf32, #tpu.memory_space<vmem>>, vector<64x128xf32>
      tpu.vector_store %arg15[%c0_21, %c0_22], %27 {strides = array<i32>} : memref<64x128xf32, #tpu.memory_space<vmem>>, vector<64x128xf32>,
    } else {
    }
    %c0_i32_14 = arith.constant 0 : i32
    %31 = arith.cmpi sgt, %arg2, %c0_i32_14 : i32
    %32 = arith.extui %31 : i1 to i32
    %c0_i32_15 = arith.constant 0 : i32
    %33 = arith.cmpi ne, %32, %c0_i32_15 : i32
    scf.if %33 {
      %c0_17 = arith.constant 0 : index
      %c0_18 = arith.constant 0 : index
      %37 = vector.load %arg13[%c0_17, %c0_18] : memref<1x128xf32, #tpu.memory_space<vmem>>, vector<1x128xf32>
      %38 = arith.cmpf ogt, %10, %37 : vector<1x128xf32>
      %c0_19 = arith.constant 0 : index
      %c0_20 = arith.constant 0 : index
      %39 = vector.load %arg15[%c0_19, %c0_20] : memref<64x128xf32, #tpu.memory_space<vmem>>, vector<64x128xf32>
      %40 = vector.shape_cast %38 : vector<1x128xi1> to vector<1x128xi1>
      %41 = vector.broadcast %40 : vector<1x128xi1> to vector<64x128xi1>
      %42 = arith.select %41, %27, %39 : vector<64x128xi1>, vector<64x128xf32>
      %c0_21 = arith.constant 0 : index
      %c0_22 = arith.constant 0 : index
      %43 = vector.load %arg15[%c0_21, %c0_22] : memref<64x128xf32, #tpu.memory_space<vmem>>, vector<64x128xf32>
      tpu.vector_store %arg15[%c0_21, %c0_22], %42 {strides = array<i32>} : memref<64x128xf32, #tpu.memory_space<vmem>>, vector<64x128xf32>,
      %c0_23 = arith.constant 0 : index
      %c0_24 = arith.constant 0 : index
      %44 = vector.load %arg14[%c0_23, %c0_24] : memref<1x128xi32, #tpu.memory_space<vmem>>, vector<1x128xi32>
      %45 = arith.select %38, %20, %44 : vector<1x128xi1>, vector<1x128xi32>
      %c0_25 = arith.constant 0 : index
      %c0_26 = arith.constant 0 : index
      %46 = vector.load %arg14[%c0_25, %c0_26] : memref<1x128xi32, #tpu.memory_space<vmem>>, vector<1x128xi32>
      tpu.vector_store %arg14[%c0_25, %c0_26], %45 {strides = array<i32>} : memref<1x128xi32, #tpu.memory_space<vmem>>, vector<1x128xi32>,
      %c0_27 = arith.constant 0 : index
      %c0_28 = arith.constant 0 : index
      %47 = vector.load %arg13[%c0_27, %c0_28] : memref<1x128xf32, #tpu.memory_space<vmem>>, vector<1x128xf32>
      %48 = arith.maximumf %10, %47 : vector<1x128xf32>
      %c0_29 = arith.constant 0 : index
      %c0_30 = arith.constant 0 : index
      %49 = vector.load %arg13[%c0_29, %c0_30] : memref<1x128xf32, #tpu.memory_space<vmem>>, vector<1x128xf32>
      tpu.vector_store %arg13[%c0_29, %c0_30], %48 {strides = array<i32>} : memref<1x128xf32, #tpu.memory_space<vmem>>, vector<1x128xf32>,
    } else {
    }
    %c1_i32 = arith.constant 1 : i32
    %34 = arith.cmpi eq, %arg2, %c1_i32 : i32
    %35 = arith.extui %34 : i1 to i32
    %c0_i32_16 = arith.constant 0 : i32
    %36 = arith.cmpi ne, %35, %c0_i32_16 : i32
    scf.if %36 {
      %c0_17 = arith.constant 0 : index
      %c0_18 = arith.constant 0 : index
      %37 = vector.load %arg15[%c0_17, %c0_18] : memref<64x128xf32, #tpu.memory_space<vmem>>, vector<64x128xf32>
      %c0_19 = arith.constant 0 : index
      %c0_20 = arith.constant 0 : index
      %38 = vector.load %arg9[%c0_19, %c0_20] : memref<64x1xf32, #tpu.memory_space<vmem>>, vector<64x1xf32>
      %39 = vector.broadcast %38 : vector<64x1xf32> to vector<64x128xf32>
      %40 = arith.addf %37, %39 : vector<64x128xf32>
      %c0_21 = arith.constant 0 : index
      %c0_22 = arith.constant 0 : index
      %c0_23 = arith.constant 0 : index
      %41 = vector.load %arg10[%c0_21, %c0_22, %c0_23] : memref<1x64x128xf32, #tpu.memory_space<vmem>>, vector<1x64x128xf32>
      %42 = vector.shape_cast %41 : vector<1x64x128xf32> to vector<64x128xf32>
      %43 = vector.shape_cast %40 : vector<64x128xf32> to vector<1x64x128xf32>
      tpu.vector_store %arg10[%c0_21, %c0_22, %c0_23], %43 {strides = array<i32>} : memref<1x64x128xf32, #tpu.memory_space<vmem>>, vector<1x64x128xf32>,
      %c0_24 = arith.constant 0 : index
      %c0_25 = arith.constant 0 : index
      %44 = vector.load %arg14[%c0_24, %c0_25] : memref<1x128xi32, #tpu.memory_space<vmem>>, vector<1x128xi32>
      %c0_26 = arith.constant 0 : index
      %c0_27 = arith.constant 0 : index
      %c0_28 = arith.constant 0 : index
      %45 = vector.load %arg11[%c0_26, %c0_27, %c0_28] : memref<1x1x128xi32, #tpu.memory_space<vmem>>, vector<1x1x128xi32>
      %46 = vector.shape_cast %45 : vector<1x1x128xi32> to vector<1x128xi32>
      %47 = vector.shape_cast %44 : vector<1x128xi32> to vector<1x1x128xi32>
      tpu.vector_store %arg11[%c0_26, %c0_27, %c0_28], %47 {strides = array<i32>} : memref<1x1x128xi32, #tpu.memory_space<vmem>>, vector<1x1x128xi32>,
    } else {
    }
    return
  }
  func.func @transform_0(%arg0: i32, %arg1: i32, %arg2: i32) -> (i32, i32, i32) {
    %c0_i32 = arith.constant 0 : i32
    %c0_i32_0 = arith.constant 0 : i32
    return %arg1, %c0_i32, %arg0 : i32, i32, i32
  }
  func.func @transform_1(%arg0: i32, %arg1: i32, %arg2: i32) -> (i32, i32) {
    %c0_i32 = arith.constant 0 : i32
    %c0_i32_0 = arith.constant 0 : i32
    %c0_i32_1 = arith.constant 0 : i32
    return %c0_i32, %c0_i32_0 : i32, i32
  }
  func.func @transform_2(%arg0: i32, %arg1: i32, %arg2: i32) -> (i32, i32) {
    %c0_i32 = arith.constant 0 : i32
    %c0_i32_0 = arith.constant 0 : i32
    %c0_i32_1 = arith.constant 0 : i32
    return %c0_i32, %c0_i32_0 : i32, i32
  }
  func.func @transform_3(%arg0: i32, %arg1: i32, %arg2: i32) -> (i32, i32) {
    %c0_i32 = arith.constant 0 : i32
    %c0_i32_0 = arith.constant 0 : i32
    return %arg2, %c0_i32 : i32, i32
  }
  func.func @transform_4(%arg0: i32, %arg1: i32, %arg2: i32) -> (i32, i32) {
    %c0_i32 = arith.constant 0 : i32
    %c0_i32_0 = arith.constant 0 : i32
    return %arg2, %c0_i32 : i32, i32
  }
  func.func @transform_5(%arg0: i32, %arg1: i32, %arg2: i32) -> (i32, i32) {
    %c0_i32 = arith.constant 0 : i32
    %c0_i32_0 = arith.constant 0 : i32
    return %c0_i32, %arg2 : i32, i32
  }
  func.func @transform_6(%arg0: i32, %arg1: i32, %arg2: i32) -> (i32, i32) {
    %c0_i32 = arith.constant 0 : i32
    %c0_i32_0 = arith.constant 0 : i32
    %c0_i32_1 = arith.constant 0 : i32
    return %c0_i32, %c0_i32_0 : i32, i32
  }
  func.func @transform_7(%arg0: i32, %arg1: i32, %arg2: i32) -> (i32, i32, i32) {
    %c0_i32 = arith.constant 0 : i32
    %c0_i32_0 = arith.constant 0 : i32
    return %arg1, %c0_i32, %arg0 : i32, i32, i32
  }
  func.func @transform_8(%arg0: i32, %arg1: i32, %arg2: i32) -> (i32, i32, i32) {
    %c0_i32 = arith.constant 0 : i32
    %c0_i32_0 = arith.constant 0 : i32
    return %arg1, %c0_i32, %arg0 : i32, i32, i32
  }
}

</mosaic_0001>

<llo_original>
// kernel: tpu_custom_call.1
$region0: #{tpu_custom_call.1}
  #allocation0 [shape = 'u32[]', space=smem, size = 0x4, offset = 0x4, fixed_abs, tag = 'smem constant byte address 0x4 - core index']
  #allocation1 [shape = 'u32[72,128]{1,0:T(1,128)}', space=vmem, size = 0x9000, scoped, tag = 'internal scratch']
  #allocation2 [shape = 'f32[32,128]{1,0:T(8,128)}', space=vmem, size = 0x4000, scoped, tag = 'scratch operand']
  #allocation3 [shape = 'f32[1,128]{1,0:T(1,128)}', space=vmem, size = 0x200, scoped, tag = 'scratch operand']
  #allocation4 [shape = 's32[1,128]{1,0:T(1,128)}', space=vmem, size = 0x200, scoped, tag = 'scratch operand']
  #allocation5 [shape = 'f32[64,128]{1,0:T(8,128)}', space=vmem, size = 0x8000, scoped, tag = 'scratch operand']
  %s0 = inlined_call_operand.vmem [shape: f32[2,64,256], index: 0, kind: input, shape index: {}]
  %s1 = inlined_call_operand.vmem [shape: f32[32,64], index: 1, kind: input, shape index: {}]
  %s2 = inlined_call_operand.vmem [shape: f32[32,1], index: 2, kind: input, shape index: {}]
  %s3 = inlined_call_operand.vmem [shape: f32[256,32], index: 3, kind: input, shape index: {}]
  %s4 = inlined_call_operand.vmem [shape: f32[256,1], index: 4, kind: input, shape index: {}]
  %s5 = inlined_call_operand.vmem [shape: bf16[64,256], index: 5, kind: input, shape index: {}]
  %s6 = inlined_call_operand.vmem [shape: f32[64,1], index: 6, kind: input, shape index: {}]
  %s7 = inlined_call_operand.hbm [shape: f32[2,64,256], index: 7, kind: output, shape index: {0}]
  %s8 = inlined_call_operand.hbm [shape: s32[2,1,256], index: 8, kind: output, shape index: {1}]
  %9 = xla_tuple %s7, %s8
  %s10 = sld [smem:[#allocation0]]
  $region164: #{tpu_custom_call.1} parent=0
    _
  %s12 = ssub.s32 1, %s10
  %s13 = scalar_select 0, %s12, %s10
  $region1: #{tpu_custom_call.1} parent=0
    #allocation6 [shape = 'u8[65536]{0}', space=vmem, size = 0x10000, scoped, tag = 'input window, operand 0']
    #allocation7 [shape = 'u8[32768]{0}', space=vmem, size = 0x8000, scoped, tag = 'input window, operand 5']
    #allocation8 [shape = 'u8[65536]{0}', space=vmem, size = 0x10000, scoped, tag = 'output window, operand 0']
    #allocation9 [shape = 's32[2]{0}', space=sflag, size = 0x8, scoped, tag = 'scoped memory for tpu_custom_call.1']
    #allocation10 [shape = 'u8[1024]{0}', space=vmem, size = 0x400, scoped, tag = 'output window, operand 1']
    #allocation11 [shape = 's32[2]{0}', space=sflag, size = 0x8, scoped, tag = 'scoped memory for tpu_custom_call.1']
    %14 = vsyncpa [#allocation9], 0
    %s15 = scalar_lea.sflag [#allocation9], 1
    %16 = vsyncpa %s15, 0
    %17 = vsyncpa [#allocation11], 0
    %s18 = scalar_lea.sflag [#allocation11], 1
    %19 = vsyncpa %s18, 0
    loop: start=0, step=1, limit=10
    $region2: #{tpu_custom_call.1} parent=1 // loop_pre_header
      _
    $region3: #{tpu_custom_call.1} parent=1 // loop_header
      %s21 = sphi 0, %s25
      %p22 = scmp.ge.s32.totalorder %s21, 10
      %s28 = sphi 0, %s47
      %s29 = sphi 0, %s43
      %s30 = sphi 0, %s39
      %s31 = sphi 0, %s28
      %s32 = sphi 0, %s29
      %s33 = sphi 0, %s30
      %s34 = sphi 0, %s31
      %s35 = sphi 0, %s32
      %s36 = sphi 0, %s33
      %s52 = sphi 0, %s54
      %s55 = sphi 0, %s52
      %s56 = sphi 0, %s55
      %s72 = sphi 0, %s56
      %s76 = sphi 0, %s76
      %s78 = sphi 0, %s76
      %s79 = sphi 0, %s78
      %s93 = sphi 0, %s79
      %s97 = sphi 0, %s97
      %s99 = sphi 0, %s97
      %s100 = sphi 0, %s99
      %s114 = sphi 0, %s100
      %s120 = sphi 0, %s122
      %s123 = sphi 0, %s120
      %s124 = sphi 0, %s123
      %s140 = sphi 0, %s124
      %s146 = sphi 0, %s148
      %s149 = sphi 0, %s146
      %s150 = sphi 0, %s149
      %s166 = sphi 0, %s150
      %s172 = sphi 0, %s174
      %s175 = sphi 0, %s172
      %s176 = sphi 0, %s175
      %s192 = sphi 0, %s176
      %s196 = sphi 0, %s196
      %s198 = sphi 0, %s196
      %s199 = sphi 0, %s198
      %s213 = sphi 0, %s199
      %s221 = sphi 0, %s223
      %s224 = sphi 0, %s221
      %s225 = sphi 0, %s224
      %s241 = sphi 0, %s225
      %s249 = sphi 0, %s251
      %s252 = sphi 0, %s249
      %s253 = sphi 0, %s252
      %s269 = sphi 0, %s253
    $region4: #{tpu_custom_call.1} parent=1 // loop_header_branch
      %24 = sbr.rel (%p22) target = $region8
    $region5: #{tpu_custom_call.1} parent=1 // loop_body
      %s26 = ssub.s32 %s21, 1
      %s27 = ssub.s32 %s21, 2
      %s37 = sadd.s32 1, %s30
      %p38 = scmp.ge.s32.totalorder %s37, 2
      %s39 = scalar_select %p38, 0, %s37
      %s40 = sadd.s32 1, %s29
      %s41 = scalar_select %p38, %s40, %s29
      %p42 = scmp.ge.s32.totalorder %s41, 2
      %s43 = scalar_select %p42, 0, %s41
      %s44 = sadd.s32 1, %s28
      %s45 = scalar_select %p42, %s44, %s28
      %p46 = scmp.ge.s32.totalorder %s45, 2
      %s47 = scalar_select %p46, 0, %s45
      %s48 = ssub.s32 %s29, %s43
      %s49 = ssub.s32 %s28, %s47
      %s50 = sor.u32 %s48, %s49
      %p51 = scmp.eq.s32.totalorder %s50, 0
      %s53 = sadd.s32 %s52, 1
      %s54 = scalar_select %p51, %s52, %s53
      %p57 = pneg %p51
      %p58 = scmp.eq.s32.totalorder %s21, 7
      %p59 = por %p57, %p58
      %p60 = scmp.ne.s32.totalorder %s52, %s55
      %p61 = scmp.eq.s32.totalorder %s21, 0
      %p62 = por %p60, %p61
      %p63 = scmp.ne.s32.totalorder %s52, %s55
      %p64 = scmp.eq.s32.totalorder %s26, 7
      %p65 = por %p63, %p64
      %p66 = scmp.ne.s32.totalorder %s55, %s56
      %p67 = scmp.eq.s32.totalorder %s26, 0
      %p68 = por %p66, %p67
      %p69 = scmp.ne.s32.totalorder %s55, %s56
      %p70 = scmp.eq.s32.totalorder %s27, 7
      %p71 = por %p69, %p70
      %p73 = scmp.ne.s32.totalorder %s56, %s72
      %p74 = scmp.eq.s32.totalorder %s27, 0
      %p75 = por %p73, %p74
      %s77 = sadd.s32 %s76, 1
      %p80 = scmp.eq.s32.totalorder %s21, 7
      %p81 = scmp.ne.s32.totalorder %s76, %s78
      %p82 = scmp.eq.s32.totalorder %s21, 0
      %p83 = por %p81, %p82
      %p84 = scmp.ne.s32.totalorder %s76, %s78
      %p85 = scmp.eq.s32.totalorder %s26, 7
      %p86 = por %p84, %p85
      %p87 = scmp.ne.s32.totalorder %s78, %s79
      %p88 = scmp.eq.s32.totalorder %s26, 0
      %p89 = por %p87, %p88
      %p90 = scmp.ne.s32.totalorder %s78, %s79
      %p91 = scmp.eq.s32.totalorder %s27, 7
      %p92 = por %p90, %p91
      %p94 = scmp.ne.s32.totalorder %s79, %s93
      %p95 = scmp.eq.s32.totalorder %s27, 0
      %p96 = por %p94, %p95
      %s98 = sadd.s32 %s97, 1
      %p101 = scmp.eq.s32.totalorder %s21, 7
      %p102 = scmp.ne.s32.totalorder %s97, %s99
      %p103 = scmp.eq.s32.totalorder %s21, 0
      %p104 = por %p102, %p103
      %p105 = scmp.ne.s32.totalorder %s97, %s99
      %p106 = scmp.eq.s32.totalorder %s26, 7
      %p107 = por %p105, %p106
      %p108 = scmp.ne.s32.totalorder %s99, %s100
      %p109 = scmp.eq.s32.totalorder %s26, 0
      %p110 = por %p108, %p109
      %p111 = scmp.ne.s32.totalorder %s99, %s100
      %p112 = scmp.eq.s32.totalorder %s27, 7
      %p113 = por %p111, %p112
      %p115 = scmp.ne.s32.totalorder %s100, %s114
      %p116 = scmp.eq.s32.totalorder %s27, 0
      %p117 = por %p115, %p116
      %s118 = ssub.s32 %s30, %s39
      %p119 = scmp.eq.s32.totalorder %s118, 0
      %s121 = sadd.s32 %s120, 1
      %s122 = scalar_select %p119, %s120, %s121
      %p125 = pneg %p119
      %p126 = scmp.eq.s32.totalorder %s21, 7
      %p127 = por %p125, %p126
      %p128 = scmp.ne.s32.totalorder %s120, %s123
      %p129 = scmp.eq.s32.totalorder %s21, 0
      %p130 = por %p128, %p129
      %p131 = scmp.ne.s32.totalorder %s120, %s123
      %p132 = scmp.eq.s32.totalorder %s26, 7
      %p133 = por %p131, %p132
      %p134 = scmp.ne.s32.totalorder %s123, %s124
      %p135 = scmp.eq.s32.totalorder %s26, 0
      %p136 = por %p134, %p135
      %p137 = scmp.ne.s32.totalorder %s123, %s124
      %p138 = scmp.eq.s32.totalorder %s27, 7
      %p139 = por %p137, %p138
      %p141 = scmp.ne.s32.totalorder %s124, %s140
      %p142 = scmp.eq.s32.totalorder %s27, 0
      %p143 = por %p141, %p142
      %s144 = ssub.s32 %s30, %s39
      %p145 = scmp.eq.s32.totalorder %s144, 0
      %s147 = sadd.s32 %s146, 1
      %s148 = scalar_select %p145, %s146, %s147
      %p151 = pneg %p145
      %p152 = scmp.eq.s32.totalorder %s21, 7
      %p153 = por %p151, %p152
      %p154 = scmp.ne.s32.totalorder %s146, %s149
      %p155 = scmp.eq.s32.totalorder %s21, 0
      %p156 = por %p154, %p155
      %p157 = scmp.ne.s32.totalorder %s146, %s149
      %p158 = scmp.eq.s32.totalorder %s26, 7
      %p159 = por %p157, %p158
      %p160 = scmp.ne.s32.totalorder %s149, %s150
      %p161 = scmp.eq.s32.totalorder %s26, 0
      %p162 = por %p160, %p161
      %p163 = scmp.ne.s32.totalorder %s149, %s150
      %p164 = scmp.eq.s32.totalorder %s27, 7
      %p165 = por %p163, %p164
      %p167 = scmp.ne.s32.totalorder %s150, %s166
      %p168 = scmp.eq.s32.totalorder %s27, 0
      %p169 = por %p167, %p168
      %s170 = ssub.s32 %s30, %s39
      %p171 = scmp.eq.s32.totalorder %s170, 0
      %s173 = sadd.s32 %s172, 1
      %s174 = scalar_select %p171, %s172, %s173
      %p177 = pneg %p171
      %p178 = scmp.eq.s32.totalorder %s21, 7
      %p179 = por %p177, %p178
      %p180 = scmp.ne.s32.totalorder %s172, %s175
      %p181 = scmp.eq.s32.totalorder %s21, 0
      %p182 = por %p180, %p181
      %p183 = scmp.ne.s32.totalorder %s172, %s175
      %p184 = scmp.eq.s32.totalorder %s26, 7
      %p185 = por %p183, %p184
      %p186 = scmp.ne.s32.totalorder %s175, %s176
      %p187 = scmp.eq.s32.totalorder %s26, 0
      %p188 = por %p186, %p187
      %p189 = scmp.ne.s32.totalorder %s175, %s176
      %p190 = scmp.eq.s32.totalorder %s27, 7
      %p191 = por %p189, %p190
      %p193 = scmp.ne.s32.totalorder %s176, %s192
      %p194 = scmp.eq.s32.totalorder %s27, 0
      %p195 = por %p193, %p194
      %s197 = sadd.s32 %s196, 1
      %p200 = scmp.eq.s32.totalorder %s21, 7
      %p201 = scmp.ne.s32.totalorder %s196, %s198
      %p202 = scmp.eq.s32.totalorder %s21, 0
      %p203 = por %p201, %p202
      %p204 = scmp.ne.s32.totalorder %s196, %s198
      %p205 = scmp.eq.s32.totalorder %s26, 7
      %p206 = por %p204, %p205
      %p207 = scmp.ne.s32.totalorder %s198, %s199
      %p208 = scmp.eq.s32.totalorder %s26, 0
      %p209 = por %p207, %p208
      %p210 = scmp.ne.s32.totalorder %s198, %s199
      %p211 = scmp.eq.s32.totalorder %s27, 7
      %p212 = por %p210, %p211
      %p214 = scmp.ne.s32.totalorder %s199, %s213
      %p215 = scmp.eq.s32.totalorder %s27, 0
      %p216 = por %p214, %p215
      %s217 = ssub.s32 %s29, %s43
      %s218 = ssub.s32 %s28, %s47
      %s219 = sor.u32 %s217, %s218
      %p220 = scmp.eq.s32.totalorder %s219, 0
      %s222 = sadd.s32 %s221, 1
      %s223 = scalar_select %p220, %s221, %s222
      %p226 = pneg %p220
      %p227 = scmp.eq.s32.totalorder %s21, 7
      %p228 = por %p226, %p227
      %p229 = scmp.ne.s32.totalorder %s221, %s224
      %p230 = scmp.eq.s32.totalorder %s21, 0
      %p231 = por %p229, %p230
      %p232 = scmp.ne.s32.totalorder %s221, %s224
      %p233 = scmp.eq.s32.totalorder %s26, 7
      %p234 = por %p232, %p233
      %p235 = scmp.ne.s32.totalorder %s224, %s225
      %p236 = scmp.eq.s32.totalorder %s26, 0
      %p237 = por %p235, %p236
      %p238 = scmp.ne.s32.totalorder %s224, %s225
      %p239 = scmp.eq.s32.totalorder %s27, 7
      %p240 = por %p238, %p239
      %p242 = scmp.ne.s32.totalorder %s225, %s241
      %p243 = scmp.eq.s32.totalorder %s27, 0
      %p244 = por %p242, %p243
      %s245 = ssub.s32 %s29, %s43
      %s246 = ssub.s32 %s28, %s47
      %s247 = sor.u32 %s245, %s246
      %p248 = scmp.eq.s32.totalorder %s247, 0
      %s250 = sadd.s32 %s249, 1
      %s251 = scalar_select %p248, %s249, %s250
      %p254 = pneg %p248
      %p255 = scmp.eq.s32.totalorder %s21, 7
      %p256 = por %p254, %p255
      %p257 = scmp.ne.s32.totalorder %s249, %s252
      %p258 = scmp.eq.s32.totalorder %s21, 0
      %p259 = por %p257, %p258
      %p260 = scmp.ne.s32.totalorder %s249, %s252
      %p261 = scmp.eq.s32.totalorder %s26, 7
      %p262 = por %p260, %p261
      %p263 = scmp.ne.s32.totalorder %s252, %s253
      %p264 = scmp.eq.s32.totalorder %s26, 0
      %p265 = por %p263, %p264
      %p266 = scmp.ne.s32.totalorder %s252, %s253
      %p267 = scmp.eq.s32.totalorder %s27, 7
      %p268 = por %p266, %p267
      %p270 = scmp.ne.s32.totalorder %s253, %s269
      %p271 = scmp.eq.s32.totalorder %s27, 0
      %p272 = por %p270, %p271
      %p273 = scmp.le.s32.totalorder 1, %s21
      %p274 = scmp.lt.s32.totalorder %s21, 9
      %p275 = pnand %p273, %p274
      %p276 = pneg %p275
      // Predicated region
      $region9: #{tpu_custom_call.1} parent=5 // pred_check
        _
      $region10: #{tpu_custom_call.1} parent=5 // pred_check_branch
        %278 = sbr.rel (%p275) target = $region12
      $region11: #{tpu_custom_call.1} parent=5 // pred_region
        %s279 = ssub.s32 %s21, 1
        // Predicated region
        $region13: #{tpu_custom_call.1} parent=11 // pred_check
          %p280 = pneg %p89
        $region14: #{tpu_custom_call.1} parent=11 // pred_check_branch
          %282 = sbr.rel (%p280) target = $region16
        $region15: #{tpu_custom_call.1} parent=11 // pred_region
          _
        $region16: #{tpu_custom_call.1} parent=11 // pred_fallthru
          _
        // Predicated region
        $region17: #{tpu_custom_call.1} parent=11 // pred_check
          %p283 = pneg %p110
        $region18: #{tpu_custom_call.1} parent=11 // pred_check_branch
          %285 = sbr.rel (%p283) target = $region20
        $region19: #{tpu_custom_call.1} parent=11 // pred_region
          _
        $region20: #{tpu_custom_call.1} parent=11 // pred_fallthru
          _
        // Predicated region
        $region21: #{tpu_custom_call.1} parent=11 // pred_check
          %p286 = pneg %p209
        $region22: #{tpu_custom_call.1} parent=11 // pred_check_branch
          %288 = sbr.rel (%p286) target = $region24
        $region23: #{tpu_custom_call.1} parent=11 // pred_region
          _
        $region24: #{tpu_custom_call.1} parent=11 // pred_fallthru
          _
      $region12: #{tpu_custom_call.1} parent=5 // pred_fallthru
        _
      %p289 = scmp.lt.s32.totalorder %s21, 8
      // Predicated region
      $region25: #{tpu_custom_call.1} parent=5 // pred_check
        %p290 = pneg %p289
      $region26: #{tpu_custom_call.1} parent=5 // pred_check_branch
        %292 = sbr.rel (%p290) target = $region28
      $region27: #{tpu_custom_call.1} parent=5 // pred_region
        // Predicated region
        $region29: #{tpu_custom_call.1} parent=27 // pred_check
          %p293 = pneg %p62
        $region30: #{tpu_custom_call.1} parent=27 // pred_check_branch
          %295 = sbr.rel (%p293) target = $region32
        $region31: #{tpu_custom_call.1} parent=27 // pred_region
          %s296 = sand.u32 %s52, 1
          %s297 = sand.u32 %s52, 1
          %s298 = smul.addr %s297, 64
          %s299 = scalar_lea.vmem [#allocation6], %s298
          %s300 = smul.addr %s29, 16
          %s301 = sadd.s32 %s28, %s300
          %s302 = smul.addr %s301, 8
          %s303 = scalar_lea.vmem %s0, %s302
          // Predicated region
          $region33: #{tpu_custom_call.1} parent=31 // pred_check
            _
          $region34: #{tpu_custom_call.1} parent=31 // pred_check_branch
            %305 = sbr.rel (0) target = $region36
          $region35: #{tpu_custom_call.1} parent=31 // pred_region
            // Predicated region
            $region37: #{tpu_custom_call.1} parent=35 // pred_check
              _
            $region38: #{tpu_custom_call.1} parent=35 // pred_check_branch
              %307 = sbr.rel (0) target = $region40
            $region39: #{tpu_custom_call.1} parent=35 // pred_region
              // Predicated region
              $region52: #{tpu_custom_call.1} parent=39 // pred_check
                _
              $region53: #{tpu_custom_call.1} parent=39 // pred_check_branch
                %337 = sbr.rel (0) target = $region55
              $region54: #{tpu_custom_call.1} parent=39 // pred_region
                loop: start=0, step=1, limit=1
                $region56: #{tpu_custom_call.1} parent=54 // loop_pre_header
                  _
                $region57: #{tpu_custom_call.1} parent=54 // loop_header
                  %s339 = sphi 0, %s343
                  %p340 = scmp.ge.s32.totalorder %s339, 1
                  %s344 = sphi %s303, %s303
                  %s345 = sphi %s299, %s299
                $region58: #{tpu_custom_call.1} parent=54 // loop_header_branch
                  %342 = sbr.rel (%p340) target = $region62
                $region59: #{tpu_custom_call.1} parent=54 // loop_body
                  %v346 = vld [vmem:[%s344] sm:$0xff]
                  %347 = vst [vmem:[%s345] sm:$0xff] %v346
                  %v348 = vld [vmem:[%s344 + $0x10] sm:$0xff]
                  %349 = vst [vmem:[%s345 + $0x8] sm:$0xff] %v348
                  %v350 = vld [vmem:[%s344 + $0x20] sm:$0xff]
                  %351 = vst [vmem:[%s345 + $0x10] sm:$0xff] %v350
                  %v352 = vld [vmem:[%s344 + $0x30] sm:$0xff]
                  %353 = vst [vmem:[%s345 + $0x18] sm:$0xff] %v352
                  %v354 = vld [vmem:[%s344 + $0x40] sm:$0xff]
                  %355 = vst [vmem:[%s345 + $0x20] sm:$0xff] %v354
                  %v356 = vld [vmem:[%s344 + $0x50] sm:$0xff]
                  %357 = vst [vmem:[%s345 + $0x28] sm:$0xff] %v356
                  %v358 = vld [vmem:[%s344 + $0x60] sm:$0xff]
                  %359 = vst [vmem:[%s345 + $0x30] sm:$0xff] %v358
                  %v360 = vld [vmem:[%s344 + $0x70] sm:$0xff]
                  %361 = vst [vmem:[%s345 + $0x38] sm:$0xff] %v360
                $region60: #{tpu_custom_call.1} parent=54 // loop_footer
                  %s343 = sadd.s32 1, %s339
                $region61: #{tpu_custom_call.1} parent=54 // loop_footer_branch
                  %338 = sbr.rel target = $region57
                $region62: #{tpu_custom_call.1} parent=54 // loop_exit
                  _
              $region55: #{tpu_custom_call.1} parent=39 // pred_fallthru
                _
              // Predicated region
              $region63: #{tpu_custom_call.1} parent=39 // pred_check
                _
              $region64: #{tpu_custom_call.1} parent=39 // pred_check_branch
                %363 = sbr.rel target = $region66
              $region65: #{tpu_custom_call.1} parent=39 // pred_region
                _
              $region66: #{tpu_custom_call.1} parent=39 // pred_fallthru
                _
            $region40: #{tpu_custom_call.1} parent=35 // pred_fallthru
              _
            // Predicated region
            $region41: #{tpu_custom_call.1} parent=35 // pred_check
              _
            $region42: #{tpu_custom_call.1} parent=35 // pred_check_branch
              %309 = sbr.rel target = $region44
            $region43: #{tpu_custom_call.1} parent=35 // pred_region
              %s311 = ssub.s32 256, 1
              loop: start=0, step=1, limit=1
              $region45: #{tpu_custom_call.1} parent=43 // loop_pre_header
                _
              $region46: #{tpu_custom_call.1} parent=43 // loop_header
                %s313 = sphi 0, %s317
                %p314 = scmp.ge.s32.totalorder %s313, 1
                %s318 = sphi %s303, %s303
                %s319 = sphi %s299, %s299
              $region47: #{tpu_custom_call.1} parent=43 // loop_header_branch
                %316 = sbr.rel (%p314) target = $region51
              $region48: #{tpu_custom_call.1} parent=43 // loop_body
                %v320 = vld [vmem:[%s318] sm:%s311]
                %321 = vst [vmem:[%s319] sm:%s311] %v320
                %v322 = vld [vmem:[%s318 + $0x10] sm:%s311]
                %323 = vst [vmem:[%s319 + $0x8] sm:%s311] %v322
                %v324 = vld [vmem:[%s318 + $0x20] sm:%s311]
                %325 = vst [vmem:[%s319 + $0x10] sm:%s311] %v324
                %v326 = vld [vmem:[%s318 + $0x30] sm:%s311]
                %327 = vst [vmem:[%s319 + $0x18] sm:%s311] %v326
                %v328 = vld [vmem:[%s318 + $0x40] sm:%s311]
                %329 = vst [vmem:[%s319 + $0x20] sm:%s311] %v328
                %v330 = vld [vmem:[%s318 + $0x50] sm:%s311]
                %331 = vst [vmem:[%s319 + $0x28] sm:%s311] %v330
                %v332 = vld [vmem:[%s318 + $0x60] sm:%s311]
                %333 = vst [vmem:[%s319 + $0x30] sm:%s311] %v332
                %v334 = vld [vmem:[%s318 + $0x70] sm:%s311]
                %335 = vst [vmem:[%s319 + $0x38] sm:%s311] %v334
              $region49: #{tpu_custom_call.1} parent=43 // loop_footer
                %s317 = sadd.s32 1, %s313
              $region50: #{tpu_custom_call.1} parent=43 // loop_footer_branch
                %312 = sbr.rel target = $region46
              $region51: #{tpu_custom_call.1} parent=43 // loop_exit
                _
            $region44: #{tpu_custom_call.1} parent=35 // pred_fallthru
              _
          $region36: #{tpu_custom_call.1} parent=31 // pred_fallthru
            _
          %364 = vnop
        $region32: #{tpu_custom_call.1} parent=27 // pred_fallthru
          _
        // Predicated region
        $region67: #{tpu_custom_call.1} parent=27 // pred_check
          %p365 = pneg %p130
        $region68: #{tpu_custom_call.1} parent=27 // pred_check_branch
          %367 = sbr.rel (%p365) target = $region70
        $region69: #{tpu_custom_call.1} parent=27 // pred_region
          %s368 = smul.u32 16, %s30
          %p369 = scmp.lt.s32.totalorder %s368, 31
          %s370 = scalar_select %p369, %s368, 31
          %s371 = smul.addr %s370, 8
          %s372 = scalar_lea.vmem %s3, %s371
          %s373 = smul.u32 16, %s30
        $region70: #{tpu_custom_call.1} parent=27 // pred_fallthru
          _
        // Predicated region
        $region71: #{tpu_custom_call.1} parent=27 // pred_check
          %p374 = pneg %p156
        $region72: #{tpu_custom_call.1} parent=27 // pred_check_branch
          %376 = sbr.rel (%p374) target = $region74
        $region73: #{tpu_custom_call.1} parent=27 // pred_region
          %s377 = smul.u32 16, %s30
          %p378 = scmp.lt.s32.totalorder %s377, 31
          %s379 = scalar_select %p378, %s377, 31
          %s380 = smul.addr %s379, 8
          %s381 = scalar_lea.vmem %s4, %s380
          %s382 = smul.u32 16, %s30
        $region74: #{tpu_custom_call.1} parent=27 // pred_fallthru
          _
        // Predicated region
        $region75: #{tpu_custom_call.1} parent=27 // pred_check
          %p383 = pneg %p182
        $region76: #{tpu_custom_call.1} parent=27 // pred_check_branch
          %385 = sbr.rel (%p383) target = $region78
        $region77: #{tpu_custom_call.1} parent=27 // pred_region
          %s386 = sand.u32 %s172, 1
          %s387 = sand.u32 %s172, 1
          %s388 = smul.addr %s387, 32
          %s389 = scalar_lea.vmem [#allocation7], %s388
          %s390 = smul.addr %s30, 4
          %s391 = scalar_lea.vmem %s5, %s390
          // Predicated region
          $region79: #{tpu_custom_call.1} parent=77 // pred_check
            _
          $region80: #{tpu_custom_call.1} parent=77 // pred_check_branch
            %393 = sbr.rel (0) target = $region82
          $region81: #{tpu_custom_call.1} parent=77 // pred_region
            // Predicated region
            $region83: #{tpu_custom_call.1} parent=81 // pred_check
              _
            $region84: #{tpu_custom_call.1} parent=81 // pred_check_branch
              %395 = sbr.rel target = $region86
            $region85: #{tpu_custom_call.1} parent=81 // pred_region
              // Predicated region
              $region98: #{tpu_custom_call.1} parent=85 // pred_check
                _
              $region99: #{tpu_custom_call.1} parent=85 // pred_check_branch
                %425 = sbr.rel (0) target = $region101
              $region100: #{tpu_custom_call.1} parent=85 // pred_region
                loop: start=0, step=1, limit=1
                $region102: #{tpu_custom_call.1} parent=100 // loop_pre_header
                  _
                $region103: #{tpu_custom_call.1} parent=100 // loop_header
                  %s427 = sphi 0, %s431
                  %p428 = scmp.ge.s32.totalorder %s427, 1
                  %s432 = sphi %s391, %s391
                  %s433 = sphi %s389, %s389
                $region104: #{tpu_custom_call.1} parent=100 // loop_header_branch
                  %430 = sbr.rel (%p428) target = $region108
                $region105: #{tpu_custom_call.1} parent=100 // loop_body
                  _
                $region106: #{tpu_custom_call.1} parent=100 // loop_footer
                  %s431 = sadd.s32 1, %s427
                $region107: #{tpu_custom_call.1} parent=100 // loop_footer_branch
                  %426 = sbr.rel target = $region103
                $region108: #{tpu_custom_call.1} parent=100 // loop_exit
                  _
                %s435 = ssub.s32 16, 1
                loop: start=0, step=1, limit=1
                $region109: #{tpu_custom_call.1} parent=100 // loop_pre_header
                  _
                $region110: #{tpu_custom_call.1} parent=100 // loop_header
                  %s437 = sphi 0, %s441
                  %p438 = scmp.ge.s32.totalorder %s437, 1
                  %s442 = sphi %s391, %s391
                  %s443 = sphi %s389, %s389
                $region111: #{tpu_custom_call.1} parent=100 // loop_header_branch
                  %440 = sbr.rel (%p438) target = $region115
                $region112: #{tpu_custom_call.1} parent=100 // loop_body
                  %v444 = vld [vmem:[%s442] sm:%s435]
                  %445 = vst [vmem:[%s443] sm:%s435] %v444
                  %v446 = vld [vmem:[%s442 + $0x8] sm:%s435]
                  %447 = vst [vmem:[%s443 + $0x4] sm:%s435] %v446
                  %v448 = vld [vmem:[%s442 + $0x10] sm:%s435]
                  %449 = vst [vmem:[%s443 + $0x8] sm:%s435] %v448
                  %v450 = vld [vmem:[%s442 + $0x18] sm:%s435]
                  %451 = vst [vmem:[%s443 + $0xc] sm:%s435] %v450
                  %v452 = vld [vmem:[%s442 + $0x20] sm:%s435]
                  %453 = vst [vmem:[%s443 + $0x10] sm:%s435] %v452
                  %v454 = vld [vmem:[%s442 + $0x28] sm:%s435]
                  %455 = vst [vmem:[%s443 + $0x14] sm:%s435] %v454
                  %v456 = vld [vmem:[%s442 + $0x30] sm:%s435]
                  %457 = vst [vmem:[%s443 + $0x18] sm:%s435] %v456
                  %v458 = vld [vmem:[%s442 + $0x38] sm:%s435]
                  %459 = vst [vmem:[%s443 + $0x1c] sm:%s435] %v458
                $region113: #{tpu_custom_call.1} parent=100 // loop_footer
                  %s441 = sadd.s32 1, %s437
                $region114: #{tpu_custom_call.1} parent=100 // loop_footer_branch
                  %436 = sbr.rel target = $region110
                $region115: #{tpu_custom_call.1} parent=100 // loop_exit
                  _
              $region101: #{tpu_custom_call.1} parent=85 // pred_fallthru
                _
            $region86: #{tpu_custom_call.1} parent=81 // pred_fallthru
              _
            // Predicated region
            $region87: #{tpu_custom_call.1} parent=81 // pred_check
              _
            $region88: #{tpu_custom_call.1} parent=81 // pred_check_branch
              %397 = sbr.rel (0) target = $region90
            $region89: #{tpu_custom_call.1} parent=81 // pred_region
              %s399 = ssub.s32 16, 1
              loop: start=0, step=1, limit=1
              $region91: #{tpu_custom_call.1} parent=89 // loop_pre_header
                _
              $region92: #{tpu_custom_call.1} parent=89 // loop_header
                %s401 = sphi 0, %s405
                %p402 = scmp.ge.s32.totalorder %s401, 1
                %s406 = sphi %s391, %s391
                %s407 = sphi %s389, %s389
              $region93: #{tpu_custom_call.1} parent=89 // loop_header_branch
                %404 = sbr.rel (%p402) target = $region97
              $region94: #{tpu_custom_call.1} parent=89 // loop_body
                %v408 = vld [vmem:[%s406] sm:%s399]
                %409 = vst [vmem:[%s407] sm:%s399] %v408
                %v410 = vld [vmem:[%s406 + $0x8] sm:%s399]
                %411 = vst [vmem:[%s407 + $0x4] sm:%s399] %v410
                %v412 = vld [vmem:[%s406 + $0x10] sm:%s399]
                %413 = vst [vmem:[%s407 + $0x8] sm:%s399] %v412
                %v414 = vld [vmem:[%s406 + $0x18] sm:%s399]
                %415 = vst [vmem:[%s407 + $0xc] sm:%s399] %v414
                %v416 = vld [vmem:[%s406 + $0x20] sm:%s399]
                %417 = vst [vmem:[%s407 + $0x10] sm:%s399] %v416
                %v418 = vld [vmem:[%s406 + $0x28] sm:%s399]
                %419 = vst [vmem:[%s407 + $0x14] sm:%s399] %v418
                %v420 = vld [vmem:[%s406 + $0x30] sm:%s399]
                %421 = vst [vmem:[%s407 + $0x18] sm:%s399] %v420
                %v422 = vld [vmem:[%s406 + $0x38] sm:%s399]
                %423 = vst [vmem:[%s407 + $0x1c] sm:%s399] %v422
              $region95: #{tpu_custom_call.1} parent=89 // loop_footer
                %s405 = sadd.s32 1, %s401
              $region96: #{tpu_custom_call.1} parent=89 // loop_footer_branch
                %400 = sbr.rel target = $region92
              $region97: #{tpu_custom_call.1} parent=89 // loop_exit
                _
            $region90: #{tpu_custom_call.1} parent=81 // pred_fallthru
              _
          $region82: #{tpu_custom_call.1} parent=77 // pred_fallthru
            _
          %460 = vnop
        $region78: #{tpu_custom_call.1} parent=27 // pred_fallthru
          _
      $region28: #{tpu_custom_call.1} parent=5 // pred_fallthru
        _
      %p461 = scmp.le.s32.totalorder 1, %s21
      %p462 = scmp.lt.s32.totalorder %s21, 9
      %p463 = pnand %p461, %p462
      %p464 = pneg %p463
      // Predicated region
      $region116: #{tpu_custom_call.1} parent=5 // pred_check
        _
      $region117: #{tpu_custom_call.1} parent=5 // pred_check_branch
        %466 = sbr.rel (%p463) target = $region119
      $region118: #{tpu_custom_call.1} parent=5 // pred_region
        %s467 = ssub.s32 %s21, 1
        %s468 = sand.u32 %s55, 1
        %s469 = sand.u32 %s55, 1
        %s470 = smul.addr %s469, 64
        %s471 = scalar_lea.vmem [#allocation6], %s470
        // Predicated region
        $region120: #{tpu_custom_call.1} parent=118 // pred_check
          %p472 = pneg %p68
        $region121: #{tpu_custom_call.1} parent=118 // pred_check_branch
          %474 = sbr.rel (%p472) target = $region123
        $region122: #{tpu_custom_call.1} parent=118 // pred_region
          _
        $region123: #{tpu_custom_call.1} parent=118 // pred_fallthru
          _
        %s475 = sand.u32 %s175, 1
        %s476 = sand.u32 %s175, 1
        %s477 = smul.addr %s476, 32
        %s478 = scalar_lea.vmem [#allocation7], %s477
        // Predicated region
        $region124: #{tpu_custom_call.1} parent=118 // pred_check
          %p479 = pneg %p188
        $region125: #{tpu_custom_call.1} parent=118 // pred_check_branch
          %481 = sbr.rel (%p479) target = $region127
        $region126: #{tpu_custom_call.1} parent=118 // pred_region
          _
        $region127: #{tpu_custom_call.1} parent=118 // pred_fallthru
          _
        %s482 = sand.u32 %s55, 1
        %s483 = sand.u32 %s55, 1
        %s484 = smul.addr %s483, 64
        %s485 = scalar_lea.vmem [#allocation6], %s484
        %p486 = pneg %p68
        %p487 = pneg %p65
        %p488 = pneg %p89
        %p489 = pneg %p86
        %p490 = pneg %p110
        %p491 = pneg %p107
        %s492 = smul.u32 16, %s33
        %p493 = scmp.lt.s32.totalorder %s492, 31
        %s494 = scalar_select %p493, %s492, 31
        %s495 = smul.addr %s494, 8
        %s496 = scalar_lea.vmem %s3, %s495
        %p497 = pneg %p136
        %p498 = pneg %p133
        %s499 = smul.u32 16, %s33
        %p500 = scmp.lt.s32.totalorder %s499, 31
        %s501 = scalar_select %p500, %s499, 31
        %s502 = smul.addr %s501, 8
        %s503 = scalar_lea.vmem %s4, %s502
        %p504 = pneg %p162
        %p505 = pneg %p159
        %s506 = sand.u32 %s175, 1
        %s507 = sand.u32 %s175, 1
        %s508 = smul.addr %s507, 32
        %s509 = scalar_lea.vmem [#allocation7], %s508
        %p510 = pneg %p188
        %p511 = pneg %p185
        %p512 = pneg %p209
        %p513 = pneg %p206
        %p514 = pneg %p237
        %p515 = pneg %p234
        %s516 = sand.u32 %s224, 1
        %s517 = scalar_lea.sflag [#allocation9], %s516
        %s518 = sand.u32 %s224, 1
        %s519 = smul.addr %s518, 64
        %s520 = scalar_lea.vmem [#allocation8], %s519
        %p521 = pneg %p265
        %p522 = pneg %p262
        %s523 = sand.u32 %s252, 1
        %s524 = scalar_lea.sflag [#allocation11], %s523
        %s525 = sand.u32 %s252, 1
        %s526 = scalar_lea.vmem [#allocation10], %s525
        %s527 = smul.u32 16, %s33
        %p528 = scmp.lt.s32.totalorder %s527, 31
        %s529 = scalar_select %p528, %s527, 31
        %s530 = smul.addr %s529, 8
        %s531 = scalar_lea.vmem %s3, %s530
        %s532 = smul.u32 16, %s33
        %s533 = smul.u32 16, %s33
        %p534 = scmp.lt.s32.totalorder %s533, 31
        %s535 = scalar_select %p534, %s533, 31
        %s536 = smul.addr %s535, 8
        %s537 = scalar_lea.vmem %s4, %s536
        %s538 = smul.u32 16, %s33
        %p539 = scmp.eq.s32.totalorder %s33, 0
        // Predicated region
        $region128: #{tpu_custom_call.1} parent=118 // pred_check
          %p540 = pneg %p539
        $region129: #{tpu_custom_call.1} parent=118 // pred_check_branch
          %542 = sbr.rel (%p540) target = $region131
        $region130: #{tpu_custom_call.1} parent=118 // pred_region
          %v543 = vld [vmem:[%s471] sm:$0xff]
          %v544 = vld [vmem:[%s471 + $0x8] sm:$0xff]
          %v545 = vld [vmem:[%s471 + $0x10] sm:$0xff]
          %v546 = vld [vmem:[%s471 + $0x18] sm:$0xff]
          %v547 = vld [vmem:[%s471 + $0x20] sm:$0xff]
          %v548 = vld [vmem:[%s471 + $0x28] sm:$0xff]
          %v549 = vld [vmem:[%s471 + $0x30] sm:$0xff]
          %v550 = vld [vmem:[%s471 + $0x38] sm:$0xff]
          %v551 = vld [vmem:[%s1] sm:$0xff]
          %v552 = vld [vmem:[%s1 + $0x8] sm:$0xff]
          %v553 = vld [vmem:[%s1 + $0x10] sm:$0xff]
          %v554 = vld [vmem:[%s1 + $0x18] sm:$0xff]
          %v555 = vld [vmem:[%s2] sm:$0xff]
          %v556 = vld [vmem:[%s2 + $0x8] sm:$0xff]
          %v557 = vld [vmem:[%s2 + $0x10] sm:$0xff]
          %v558 = vld [vmem:[%s2 + $0x18] sm:$0xff]
          %560 = vset.pattern.permute.xlu0 0
          %561 = vperm.xlu0 %560, %v555
          %v562 = vpop.permute.xlu0 %561
          %565 = vset.pattern.permute.xlu0 0
          %566 = vperm.xlu0 %565, %v556
          %v567 = vpop.permute.xlu0 %566
          %570 = vset.pattern.permute.xlu0 0
          %571 = vperm.xlu0 %570, %v557
          %v572 = vpop.permute.xlu0 %571
          %575 = vset.pattern.permute.xlu0 0
          %576 = vperm.xlu0 %575, %v558
          %v577 = vpop.permute.xlu0 %576
          %vm579 = vcmask 523264
          %v581 = vsel %vm579, %v551, 0
          %v584 = vsel %vm579, %v552, 0
          %v587 = vsel %vm579, %v553, 0
          %v590 = vsel %vm579, %v554, 0
          %592 = vmatpush.msra.mxu0 0.0
          %593 = vmatpush.msra.mxu0 0.0
          %594 = vmatpush.msra.mxu0 0.0
          %595 = vmatpush.msra.mxu0 0.0
          %596 = vmatpush.msra.mxu0 0.0
          %597 = vmatpush.msra.mxu0 0.0
          %598 = vmatpush.msra.mxu0 0.0
          %599 = vmatpush.msra.mxu0 0.0
          %600 = vmatpush.msra.mxu0 %v550
          %601 = vmatpush.msra.mxu0 %v549
          %602 = vmatpush.msra.mxu0 %v548
          %603 = vmatpush.msra.mxu0 %v547
          %604 = vmatpush.msra.mxu0 %v546
          %605 = vmatpush.msra.mxu0 %v545
          %606 = vmatpush.msra.mxu0 %v544
          %607 = vmatpush.msra.mxu0 %v543
          %608 = vmatmul.f32.gmra.mxu0 %v581
          %v609 = vpop.f32.mrf.mxu0
          %v610 = vadd.f32 %v562, %v609
          %611 = vmatmul.f32.gmra.mxu0 %v584
          %v612 = vpop.f32.mrf.mxu0
          %v613 = vadd.f32 %v567, %v612
          %614 = vmatmul.f32.gmra.mxu0 %v587
          %v615 = vpop.f32.mrf.mxu0
          %v616 = vadd.f32 %v572, %v615
          %617 = vmatmul.f32.gmra.mxu0 %v590
          %v618 = vpop.f32.mrf.mxu0
          %v619 = vadd.f32 %v577, %v618
          %620 = vdwg.mxu0
          %v621 = vmul.f32 %v610, %v610
          %v622 = vmul.f32 %v613, %v613
          %v623 = vmul.f32 %v616, %v616
          %v624 = vmul.f32 %v619, %v619
          %v625 = vadd.f32 %v621, %v622
          %v626 = vadd.f32 %v625, %v623
          %v627 = vadd.f32 %v626, %v624
          %v628 = vrot.slane %v627, 4
          %v629 = vadd.f32 %v627, %v628
          %v630 = vrot.slane %v629, 2
          %v631 = vadd.f32 %v629, %v630
          %v632 = vrot.slane %v631, 1
          %v633 = vadd.f32 %v631, %v632
          %v634 = vmax.f32 %v633, 1e-24
          %v635 = vrsqrt.pop %v634
          %v636 = vmul.f32 %v635, %v634
          %v637 = vmul.f32 %v636, %v635
          %v638 = vmul.f32 0.5, %v637
          %v639 = vsub.f32 1.5, %v638
          %v640 = vmul.f32 %v635, %v639
          %vm641 = vweird.f32 %v634
          %vm642 = vweird.f32 %v635
          %vm643 = vmor %vm641, %vm642
          %v644 = vsel %vm643, %v635, %v640
          %v645 = vmul.f32 %v610, %v644
          %v646 = vmul.f32 %v613, %v644
          %v647 = vmul.f32 %v616, %v644
          %v648 = vmul.f32 %v619, %v644
          %649 = vst [vmem:[#allocation2] sm:$0xff] %v645
          %650 = vst [vmem:[#allocation2 + $0x8] sm:$0xff] %v646
          %651 = vst [vmem:[#allocation2 + $0x10] sm:$0xff] %v647
          %652 = vst [vmem:[#allocation2 + $0x18] sm:$0xff] %v648
        $region131: #{tpu_custom_call.1} parent=118 // pred_fallthru
          _
        %v653 = vld [vmem:[%s531] sm:$0xff]
        %v654 = vld [vmem:[%s531 + $0x8] sm:$0xff]
        %v655 = vld [vmem:[%s531 + $0x10] sm:$0xff]
        %v656 = vld [vmem:[%s531 + $0x18] sm:$0xff]
        %v657 = vld [vmem:[%s531 + $0x20] sm:$0xff]
        %v658 = vld [vmem:[%s531 + $0x28] sm:$0xff]
        %v659 = vld [vmem:[%s531 + $0x30] sm:$0xff]
        %v660 = vld [vmem:[%s531 + $0x38] sm:$0xff]
        %v661 = vld [vmem:[%s531 + $0x40] sm:$0xff]
        %v662 = vld [vmem:[%s531 + $0x48] sm:$0xff]
        %v663 = vld [vmem:[%s531 + $0x50] sm:$0xff]
        %v664 = vld [vmem:[%s531 + $0x58] sm:$0xff]
        %v665 = vld [vmem:[%s531 + $0x60] sm:$0xff]
        %v666 = vld [vmem:[%s531 + $0x68] sm:$0xff]
        %v667 = vld [vmem:[%s531 + $0x70] sm:$0xff]
        %v668 = vld [vmem:[%s531 + $0x78] sm:$0xff]
        %v669 = vld [vmem:[#allocation2] sm:$0xff]
        %v670 = vld [vmem:[#allocation2 + $0x8] sm:$0xff]
        %v671 = vld [vmem:[#allocation2 + $0x10] sm:$0xff]
        %v672 = vld [vmem:[#allocation2 + $0x18] sm:$0xff]
        %vm673 = vcmask 261120
        %v675 = vsel %vm673, %v653, 0
        %v678 = vsel %vm673, %v654, 0
        %v681 = vsel %vm673, %v655, 0
        %v684 = vsel %vm673, %v656, 0
        %v687 = vsel %vm673, %v657, 0
        %v690 = vsel %vm673, %v658, 0
        %v693 = vsel %vm673, %v659, 0
        %v696 = vsel %vm673, %v660, 0
        %v699 = vsel %vm673, %v661, 0
        %v702 = vsel %vm673, %v662, 0
        %v705 = vsel %vm673, %v663, 0
        %v708 = vsel %vm673, %v664, 0
        %v711 = vsel %vm673, %v665, 0
        %v714 = vsel %vm673, %v666, 0
        %v717 = vsel %vm673, %v667, 0
        %v720 = vsel %vm673, %v668, 0
        %722 = vmatpush.msra.mxu0 0.0
        %723 = vmatpush.msra.mxu0 0.0
        %724 = vmatpush.msra.mxu0 0.0
        %725 = vmatpush.msra.mxu0 0.0
        %726 = vmatpush.msra.mxu0 0.0
        %727 = vmatpush.msra.mxu0 0.0
        %728 = vmatpush.msra.mxu0 0.0
        %729 = vmatpush.msra.mxu0 0.0
        %730 = vmatpush.msra.mxu0 0.0
        %731 = vmatpush.msra.mxu0 0.0
        %732 = vmatpush.msra.mxu0 0.0
        %733 = vmatpush.msra.mxu0 0.0
        %734 = vmatpush.msra.mxu0 %v672
        %735 = vmatpush.msra.mxu0 %v671
        %736 = vmatpush.msra.mxu0 %v670
        %737 = vmatpush.msra.mxu0 %v669
        %738 = vmatmul.f32.gmra.mxu0 %v675
        %v739 = vpop.f32.mrf.mxu0
        %v740 = vadd.f32 0.0, %v739
        %741 = vmatmul.f32.gmra.mxu0 %v678
        %v742 = vpop.f32.mrf.mxu0
        %v743 = vadd.f32 0.0, %v742
        %744 = vmatmul.f32.gmra.mxu0 %v681
        %v745 = vpop.f32.mrf.mxu0
        %v746 = vadd.f32 0.0, %v745
        %747 = vmatmul.f32.gmra.mxu0 %v684
        %v748 = vpop.f32.mrf.mxu0
        %v749 = vadd.f32 0.0, %v748
        %750 = vmatmul.f32.gmra.mxu0 %v687
        %v751 = vpop.f32.mrf.mxu0
        %v752 = vadd.f32 0.0, %v751
        %753 = vmatmul.f32.gmra.mxu0 %v690
        %v754 = vpop.f32.mrf.mxu0
        %v755 = vadd.f32 0.0, %v754
        %756 = vmatmul.f32.gmra.mxu0 %v693
        %v757 = vpop.f32.mrf.mxu0
        %v758 = vadd.f32 0.0, %v757
        %759 = vmatmul.f32.gmra.mxu0 %v696
        %v760 = vpop.f32.mrf.mxu0
        %v761 = vadd.f32 0.0, %v760
        %762 = vmatmul.f32.gmra.mxu0 %v699
        %v763 = vpop.f32.mrf.mxu0
        %v764 = vadd.f32 0.0, %v763
        %765 = vmatmul.f32.gmra.mxu0 %v702
        %v766 = vpop.f32.mrf.mxu0
        %v767 = vadd.f32 0.0, %v766
        %768 = vmatmul.f32.gmra.mxu0 %v705
        %v769 = vpop.f32.mrf.mxu0
        %v770 = vadd.f32 0.0, %v769
        %771 = vmatmul.f32.gmra.mxu0 %v708
        %v772 = vpop.f32.mrf.mxu0
        %v773 = vadd.f32 0.0, %v772
        %774 = vmatmul.f32.gmra.mxu0 %v711
        %v775 = vpop.f32.mrf.mxu0
        %v776 = vadd.f32 0.0, %v775
        %777 = vmatmul.f32.gmra.mxu0 %v714
        %v778 = vpop.f32.mrf.mxu0
        %v779 = vadd.f32 0.0, %v778
        %780 = vmatmul.f32.gmra.mxu0 %v717
        %v781 = vpop.f32.mrf.mxu0
        %v782 = vadd.f32 0.0, %v781
        %783 = vmatmul.f32.gmra.mxu0 %v720
        %v784 = vpop.f32.mrf.mxu0
        %v785 = vadd.f32 0.0, %v784
        %786 = vdwg.mxu0
        %v787 = vld [vmem:[%s537] sm:$0xff]
        %v788 = vld [vmem:[%s537 + $0x8] sm:$0xff]
        %v789 = vld [vmem:[%s537 + $0x10] sm:$0xff]
        %v790 = vld [vmem:[%s537 + $0x18] sm:$0xff]
        %v791 = vld [vmem:[%s537 + $0x20] sm:$0xff]
        %v792 = vld [vmem:[%s537 + $0x28] sm:$0xff]
        %v793 = vld [vmem:[%s537 + $0x30] sm:$0xff]
        %v794 = vld [vmem:[%s537 + $0x38] sm:$0xff]
        %v795 = vld [vmem:[%s537 + $0x40] sm:$0xff]
        %v796 = vld [vmem:[%s537 + $0x48] sm:$0xff]
        %v797 = vld [vmem:[%s537 + $0x50] sm:$0xff]
        %v798 = vld [vmem:[%s537 + $0x58] sm:$0xff]
        %v799 = vld [vmem:[%s537 + $0x60] sm:$0xff]
        %v800 = vld [vmem:[%s537 + $0x68] sm:$0xff]
        %v801 = vld [vmem:[%s537 + $0x70] sm:$0xff]
        %v802 = vld [vmem:[%s537 + $0x78] sm:$0xff]
        %804 = vset.pattern.permute.xlu0 0
        %805 = vperm.xlu0 %804, %v787
        %v806 = vpop.permute.xlu0 %805
        %809 = vset.pattern.permute.xlu0 0
        %810 = vperm.xlu0 %809, %v788
        %v811 = vpop.permute.xlu0 %810
        %814 = vset.pattern.permute.xlu0 0
        %815 = vperm.xlu0 %814, %v789
        %v816 = vpop.permute.xlu0 %815
        %819 = vset.pattern.permute.xlu0 0
        %820 = vperm.xlu0 %819, %v790
        %v821 = vpop.permute.xlu0 %820
        %824 = vset.pattern.permute.xlu0 0
        %825 = vperm.xlu0 %824, %v791
        %v826 = vpop.permute.xlu0 %825
        %829 = vset.pattern.permute.xlu0 0
        %830 = vperm.xlu0 %829, %v792
        %v831 = vpop.permute.xlu0 %830
        %834 = vset.pattern.permute.xlu0 0
        %835 = vperm.xlu0 %834, %v793
        %v836 = vpop.permute.xlu0 %835
        %839 = vset.pattern.permute.xlu0 0
        %840 = vperm.xlu0 %839, %v794
        %v841 = vpop.permute.xlu0 %840
        %844 = vset.pattern.permute.xlu0 0
        %845 = vperm.xlu0 %844, %v795
        %v846 = vpop.permute.xlu0 %845
        %849 = vset.pattern.permute.xlu0 0
        %850 = vperm.xlu0 %849, %v796
        %v851 = vpop.permute.xlu0 %850
        %854 = vset.pattern.permute.xlu0 0
        %855 = vperm.xlu0 %854, %v797
        %v856 = vpop.permute.xlu0 %855
        %859 = vset.pattern.permute.xlu0 0
        %860 = vperm.xlu0 %859, %v798
        %v861 = vpop.permute.xlu0 %860
        %864 = vset.pattern.permute.xlu0 0
        %865 = vperm.xlu0 %864, %v799
        %v866 = vpop.permute.xlu0 %865
        %869 = vset.pattern.permute.xlu0 0
        %870 = vperm.xlu0 %869, %v800
        %v871 = vpop.permute.xlu0 %870
        %874 = vset.pattern.permute.xlu0 0
        %875 = vperm.xlu0 %874, %v801
        %v876 = vpop.permute.xlu0 %875
        %879 = vset.pattern.permute.xlu0 0
        %880 = vperm.xlu0 %879, %v802
        %v881 = vpop.permute.xlu0 %880
        %v883 = vsub.f32 %v740, %v806
        %v884 = vsub.f32 %v743, %v811
        %v885 = vsub.f32 %v746, %v816
        %v886 = vsub.f32 %v749, %v821
        %v887 = vsub.f32 %v752, %v826
        %v888 = vsub.f32 %v755, %v831
        %v889 = vsub.f32 %v758, %v836
        %v890 = vsub.f32 %v761, %v841
        %v891 = vsub.f32 %v764, %v846
        %v892 = vsub.f32 %v767, %v851
        %v893 = vsub.f32 %v770, %v856
        %v894 = vsub.f32 %v773, %v861
        %v895 = vsub.f32 %v776, %v866
        %v896 = vsub.f32 %v779, %v871
        %v897 = vsub.f32 %v782, %v876
        %v898 = vsub.f32 %v785, %v881
        %v899 = vmax.f32 %v883, %v887
        %v900 = vmax.f32 %v884, %v888
        %v901 = vmax.f32 %v885, %v889
        %v902 = vmax.f32 %v886, %v890
        %v903 = vmax.f32 %v899, %v891
        %v904 = vmax.f32 %v900, %v892
        %v905 = vmax.f32 %v901, %v893
        %v906 = vmax.f32 %v902, %v894
        %v907 = vmax.f32 %v903, %v895
        %v908 = vmax.f32 %v904, %v896
        %v909 = vmax.f32 %v905, %v897
        %v910 = vmax.f32 %v906, %v898
        %v911 = vmax.f32 %v907, %v908
        %v912 = vmax.f32 %v909, %v910
        %v913 = vmax.f32 %v911, %v912
        %v914 = vrot.slane %v913, 4
        %v915 = vmax.f32 %v913, %v914
        %v916 = vrot.slane %v915, 2
        %v917 = vmax.f32 %v915, %v916
        %v918 = vrot.slane %v917, 1
        %v919 = vmax.f32 %v917, %v918
        %v920 = vlaneseq
        %v921 = vshrl.u32 %v920, 7
        %v922 = vadd.s32 %v921, 8
        %v923 = vadd.s32 %v921, 16
        %v924 = vadd.s32 %v921, 24
        %v925 = vadd.s32 %v921, 32
        %v926 = vadd.s32 %v921, 40
        %v927 = vadd.s32 %v921, 48
        %v928 = vadd.s32 %v921, 56
        %v929 = vadd.s32 %v921, 64
        %v930 = vadd.s32 %v921, 72
        %v931 = vadd.s32 %v921, 80
        %v932 = vadd.s32 %v921, 88
        %v933 = vadd.s32 %v921, 96
        %v934 = vadd.s32 %v921, 104
        %v935 = vadd.s32 %v921, 112
        %v936 = vadd.s32 %v921, 120
        %vm937 = vcmp.eq.f32.partialorder %v883, %v919
        %vm938 = vcmp.eq.f32.partialorder %v884, %v919
        %vm939 = vcmp.eq.f32.partialorder %v885, %v919
        %vm940 = vcmp.eq.f32.partialorder %v886, %v919
        %vm941 = vcmp.eq.f32.partialorder %v887, %v919
        %vm942 = vcmp.eq.f32.partialorder %v888, %v919
        %vm943 = vcmp.eq.f32.partialorder %v889, %v919
        %vm944 = vcmp.eq.f32.partialorder %v890, %v919
        %vm945 = vcmp.eq.f32.partialorder %v891, %v919
        %vm946 = vcmp.eq.f32.partialorder %v892, %v919
        %vm947 = vcmp.eq.f32.partialorder %v893, %v919
        %vm948 = vcmp.eq.f32.partialorder %v894, %v919
        %vm949 = vcmp.eq.f32.partialorder %v895, %v919
        %vm950 = vcmp.eq.f32.partialorder %v896, %v919
        %vm951 = vcmp.eq.f32.partialorder %v897, %v919
        %vm952 = vcmp.eq.f32.partialorder %v898, %v919
        %v953 = vsel %vm937, %v921, 128
        %v954 = vsel %vm938, %v922, 128
        %v955 = vsel %vm939, %v923, 128
        %v956 = vsel %vm940, %v924, 128
        %v957 = vsel %vm941, %v925, 128
        %v958 = vsel %vm942, %v926, 128
        %v959 = vsel %vm943, %v927, 128
        %v960 = vsel %vm944, %v928, 128
        %v961 = vsel %vm945, %v929, 128
        %v962 = vsel %vm946, %v930, 128
        %v963 = vsel %vm947, %v931, 128
        %v964 = vsel %vm948, %v932, 128
        %v965 = vsel %vm949, %v933, 128
        %v966 = vsel %vm950, %v934, 128
        %v967 = vsel %vm951, %v935, 128
        %v968 = vsel %vm952, %v936, 128
        %vm969 = vcmp.lt.s32.totalorder %v953, %v957
        %v970 = vsel %vm969, %v953, %v957
        %vm971 = vcmp.lt.s32.totalorder %v954, %v958
        %v972 = vsel %vm971, %v954, %v958
        %vm973 = vcmp.lt.s32.totalorder %v955, %v959
        %v974 = vsel %vm973, %v955, %v959
        %vm975 = vcmp.lt.s32.totalorder %v956, %v960
        %v976 = vsel %vm975, %v956, %v960
        %vm977 = vcmp.lt.s32.totalorder %v970, %v961
        %v978 = vsel %vm977, %v970, %v961
        %vm979 = vcmp.lt.s32.totalorder %v972, %v962
        %v980 = vsel %vm979, %v972, %v962
        %vm981 = vcmp.lt.s32.totalorder %v974, %v963
        %v982 = vsel %vm981, %v974, %v963
        %vm983 = vcmp.lt.s32.totalorder %v976, %v964
        %v984 = vsel %vm983, %v976, %v964
        %vm985 = vcmp.lt.s32.totalorder %v978, %v965
        %v986 = vsel %vm985, %v978, %v965
        %vm987 = vcmp.lt.s32.totalorder %v980, %v966
        %v988 = vsel %vm987, %v980, %v966
        %vm989 = vcmp.lt.s32.totalorder %v982, %v967
        %v990 = vsel %vm989, %v982, %v967
        %vm991 = vcmp.lt.s32.totalorder %v984, %v968
        %v992 = vsel %vm991, %v984, %v968
        %vm993 = vcmp.lt.s32.totalorder %v986, %v988
        %v994 = vsel %vm993, %v986, %v988
        %vm995 = vcmp.lt.s32.totalorder %v990, %v992
        %v996 = vsel %vm995, %v990, %v992
        %vm997 = vcmp.lt.s32.totalorder %v994, %v996
        %v998 = vsel %vm997, %v994, %v996
        %v999 = vrot.slane %v998, 4
        %vm1000 = vcmp.lt.s32.totalorder %v998, %v999
        %v1001 = vsel %vm1000, %v998, %v999
        %v1002 = vrot.slane %v1001, 2
        %vm1003 = vcmp.lt.s32.totalorder %v1001, %v1002
        %v1004 = vsel %vm1003, %v1001, %v1002
        %v1005 = vrot.slane %v1004, 1
        %vm1006 = vcmp.lt.s32.totalorder %v1004, %v1005
        %v1007 = vsel %vm1006, %v1004, %v1005
        %s1008 = smul.u32 %s33, 128
        %v1009 = vstv %s1008
        %v1010 = vadd.s32 %v1007, %v1009
        %vm1011 = vcmp.eq.s32.totalorder %v921, %v1007
        %vm1012 = vcmp.eq.s32.totalorder %v922, %v1007
        %vm1013 = vcmp.eq.s32.totalorder %v923, %v1007
        %vm1014 = vcmp.eq.s32.totalorder %v924, %v1007
        %vm1015 = vcmp.eq.s32.totalorder %v925, %v1007
        %vm1016 = vcmp.eq.s32.totalorder %v926, %v1007
        %vm1017 = vcmp.eq.s32.totalorder %v927, %v1007
        %vm1018 = vcmp.eq.s32.totalorder %v928, %v1007
        %vm1019 = vcmp.eq.s32.totalorder %v929, %v1007
        %vm1020 = vcmp.eq.s32.totalorder %v930, %v1007
        %vm1021 = vcmp.eq.s32.totalorder %v931, %v1007
        %vm1022 = vcmp.eq.s32.totalorder %v932, %v1007
        %vm1023 = vcmp.eq.s32.totalorder %v933, %v1007
        %vm1024 = vcmp.eq.s32.totalorder %v934, %v1007
        %vm1025 = vcmp.eq.s32.totalorder %v935, %v1007
        %vm1026 = vcmp.eq.s32.totalorder %v936, %v1007
        %v1027 = vsel %vm1011, 1, 0
        %v1028 = vsel %vm1012, 1, 0
        %v1029 = vsel %vm1013, 1, 0
        %v1030 = vsel %vm1014, 1, 0
        %v1031 = vsel %vm1015, 1, 0
        %v1032 = vsel %vm1016, 1, 0
        %v1033 = vsel %vm1017, 1, 0
        %v1034 = vsel %vm1018, 1, 0
        %v1035 = vsel %vm1019, 1, 0
        %v1036 = vsel %vm1020, 1, 0
        %v1037 = vsel %vm1021, 1, 0
        %v1038 = vsel %vm1022, 1, 0
        %v1039 = vsel %vm1023, 1, 0
        %v1040 = vsel %vm1024, 1, 0
        %v1041 = vsel %vm1025, 1, 0
        %v1042 = vsel %vm1026, 1, 0
        %v1043 = vcvt.s32.f32 %v1027
        %v1044 = vcvt.s32.f32 %v1028
        %v1045 = vcvt.s32.f32 %v1029
        %v1046 = vcvt.s32.f32 %v1030
        %v1047 = vcvt.s32.f32 %v1031
        %v1048 = vcvt.s32.f32 %v1032
        %v1049 = vcvt.s32.f32 %v1033
        %v1050 = vcvt.s32.f32 %v1034
        %v1051 = vcvt.s32.f32 %v1035
        %v1052 = vcvt.s32.f32 %v1036
        %v1053 = vcvt.s32.f32 %v1037
        %v1054 = vcvt.s32.f32 %v1038
        %v1055 = vcvt.s32.f32 %v1039
        %v1056 = vcvt.s32.f32 %v1040
        %v1057 = vcvt.s32.f32 %v1041
        %v1058 = vcvt.s32.f32 %v1042
        %v1059 = vpack.c.bf16 %v1044, %v1043
        %v1060 = vpack.c.bf16 %v1046, %v1045
        %v1061 = vpack.c.bf16 %v1048, %v1047
        %v1062 = vpack.c.bf16 %v1050, %v1049
        %v1063 = vpack.c.bf16 %v1052, %v1051
        %v1064 = vpack.c.bf16 %v1054, %v1053
        %v1065 = vpack.c.bf16 %v1056, %v1055
        %v1066 = vpack.c.bf16 %v1058, %v1057
        %v1067 = vld [vmem:[%s478] sm:$0xf]
        %v1068 = vld [vmem:[%s478 + $0x4] sm:$0xf]
        %v1069 = vld [vmem:[%s478 + $0x8] sm:$0xf]
        %v1070 = vld [vmem:[%s478 + $0xc] sm:$0xf]
        %v1071 = vld [vmem:[%s478 + $0x10] sm:$0xf]
        %v1072 = vld [vmem:[%s478 + $0x14] sm:$0xf]
        %v1073 = vld [vmem:[%s478 + $0x18] sm:$0xf]
        %v1074 = vld [vmem:[%s478 + $0x1c] sm:$0xf]
        %v1083 = vunpack.c.l.b16 %v1067
        %v1084 = vunpack.c.l.b16 %v1068
        %v1085 = vunpack.c.l.b16 %v1069
        %v1086 = vunpack.c.l.b16 %v1070
        %v1087 = vunpack.c.l.b16 %v1071
        %v1088 = vunpack.c.l.b16 %v1072
        %v1089 = vunpack.c.l.b16 %v1073
        %v1090 = vunpack.c.l.b16 %v1074
        %v1091 = vpack.c.b16 %v1084, %v1083
        %v1092 = vpack.c.b16 %v1086, %v1085
        %v1093 = vpack.c.b16 %v1088, %v1087
        %v1094 = vpack.c.b16 %v1090, %v1089
        %1099 = vmatpush.bf16.msra.mxu0 %v1066
        %1100 = vmatpush.bf16.msra.mxu0 %v1065
        %1101 = vmatpush.bf16.msra.mxu0 %v1064
        %1102 = vmatpush.bf16.msra.mxu0 %v1063
        %1103 = vmatpush.bf16.msra.mxu0 %v1062
        %1104 = vmatpush.bf16.msra.mxu0 %v1061
        %1105 = vmatpush.bf16.msra.mxu0 %v1060
        %1106 = vmatpush.bf16.msra.mxu0 %v1059
        %1107 = vmatmul.bf16.gmra.mxu0 %v1091
        %v1108 = vpop.f32.mrf.mxu0
        %v1109 = vadd.f32 0.0, %v1108
        %v1110 = vpop.f32.mrf.mxu0
        %v1111 = vadd.f32 0.0, %v1110
        %1112 = vmatmul.bf16.gmra.mxu0 %v1092
        %v1113 = vpop.f32.mrf.mxu0
        %v1114 = vadd.f32 0.0, %v1113
        %v1115 = vpop.f32.mrf.mxu0
        %v1116 = vadd.f32 0.0, %v1115
        %1117 = vmatmul.bf16.gmra.mxu0 %v1093
        %v1118 = vpop.f32.mrf.mxu0
        %v1119 = vadd.f32 0.0, %v1118
        %v1120 = vpop.f32.mrf.mxu0
        %v1121 = vadd.f32 0.0, %v1120
        %1122 = vmatmul.bf16.gmra.mxu0 %v1094
        %v1123 = vpop.f32.mrf.mxu0
        %v1124 = vadd.f32 0.0, %v1123
        %v1125 = vpop.f32.mrf.mxu0
        %v1126 = vadd.f32 0.0, %v1125
        %1127 = vdwg.mxu0
        // Predicated region
        $region132: #{tpu_custom_call.1} parent=118 // pred_check
          %p1128 = pneg %p539
        $region133: #{tpu_custom_call.1} parent=118 // pred_check_branch
          %1130 = sbr.rel (%p1128) target = $region135
        $region134: #{tpu_custom_call.1} parent=118 // pred_region
          %1131 = vst [vmem:[#allocation3] sm:$0x1] %v919
          %1132 = vst [vmem:[#allocation4] sm:$0x1] %v1010
          %1133 = vst [vmem:[#allocation5] sm:$0xff] %v1109
          %1134 = vst [vmem:[#allocation5 + $0x8] sm:$0xff] %v1111
          %1135 = vst [vmem:[#allocation5 + $0x10] sm:$0xff] %v1114
          %1136 = vst [vmem:[#allocation5 + $0x18] sm:$0xff] %v1116
          %1137 = vst [vmem:[#allocation5 + $0x20] sm:$0xff] %v1119
          %1138 = vst [vmem:[#allocation5 + $0x28] sm:$0xff] %v1121
          %1139 = vst [vmem:[#allocation5 + $0x30] sm:$0xff] %v1124
          %1140 = vst [vmem:[#allocation5 + $0x38] sm:$0xff] %v1126
        $region135: #{tpu_custom_call.1} parent=118 // pred_fallthru
          _
        %p1141 = scmp.gt.s32.totalorder %s33, 0
        // Predicated region
        $region136: #{tpu_custom_call.1} parent=118 // pred_check
          %p1142 = pneg %p1141
        $region137: #{tpu_custom_call.1} parent=118 // pred_check_branch
          %1144 = sbr.rel (%p1142) target = $region139
        $region138: #{tpu_custom_call.1} parent=118 // pred_region
          %v1145 = vld [vmem:[#allocation3] sm:$0x1]
          %vm1146 = vcmp.gt.f32.partialorder %v919, %v1145
          %v1147 = vld [vmem:[#allocation5] sm:$0xff]
          %v1148 = vld [vmem:[#allocation5 + $0x8] sm:$0xff]
          %v1149 = vld [vmem:[#allocation5 + $0x10] sm:$0xff]
          %v1150 = vld [vmem:[#allocation5 + $0x18] sm:$0xff]
          %v1151 = vld [vmem:[#allocation5 + $0x20] sm:$0xff]
          %v1152 = vld [vmem:[#allocation5 + $0x28] sm:$0xff]
          %v1153 = vld [vmem:[#allocation5 + $0x30] sm:$0xff]
          %v1154 = vld [vmem:[#allocation5 + $0x38] sm:$0xff]
          %v1155 = vsel %vm1146, 1, 0
          %v1156 = vperm.slane %v1155, 0
          %vm1157 = vcmp.eq.s32.totalorder %v1156, 1
          %v1158 = vsel %vm1157, %v1109, %v1147
          %v1159 = vsel %vm1157, %v1111, %v1148
          %v1160 = vsel %vm1157, %v1114, %v1149
          %v1161 = vsel %vm1157, %v1116, %v1150
          %v1162 = vsel %vm1157, %v1119, %v1151
          %v1163 = vsel %vm1157, %v1121, %v1152
          %v1164 = vsel %vm1157, %v1124, %v1153
          %v1165 = vsel %vm1157, %v1126, %v1154
          %1166 = vst [vmem:[#allocation5] sm:$0xff] %v1158
          %1167 = vst [vmem:[#allocation5 + $0x8] sm:$0xff] %v1159
          %1168 = vst [vmem:[#allocation5 + $0x10] sm:$0xff] %v1160
          %1169 = vst [vmem:[#allocation5 + $0x18] sm:$0xff] %v1161
          %1170 = vst [vmem:[#allocation5 + $0x20] sm:$0xff] %v1162
          %1171 = vst [vmem:[#allocation5 + $0x28] sm:$0xff] %v1163
          %1172 = vst [vmem:[#allocation5 + $0x30] sm:$0xff] %v1164
          %1173 = vst [vmem:[#allocation5 + $0x38] sm:$0xff] %v1165
          %v1174 = vld [vmem:[#allocation4] sm:$0x1]
          %v1175 = vsel %vm1146, %v1010, %v1174
          %1176 = vst [vmem:[#allocation4] sm:$0x1] %v1175
          %v1177 = vld [vmem:[#allocation3] sm:$0x1]
          %v1178 = vmax.f32 %v919, %v1177
          %1179 = vst [vmem:[#allocation3] sm:$0x1] %v1178
        $region139: #{tpu_custom_call.1} parent=118 // pred_fallthru
          _
        %p1180 = scmp.eq.s32.totalorder %s33, 1
        // Predicated region
        $region140: #{tpu_custom_call.1} parent=118 // pred_check
          %p1181 = pneg %p1180
        $region141: #{tpu_custom_call.1} parent=118 // pred_check_branch
          %1183 = sbr.rel (%p1181) target = $region143
        $region142: #{tpu_custom_call.1} parent=118 // pred_region
          %v1184 = vld [vmem:[#allocation5] sm:$0xff]
          %v1185 = vld [vmem:[#allocation5 + $0x8] sm:$0xff]
          %v1186 = vld [vmem:[#allocation5 + $0x10] sm:$0xff]
          %v1187 = vld [vmem:[#allocation5 + $0x18] sm:$0xff]
          %v1188 = vld [vmem:[#allocation5 + $0x20] sm:$0xff]
          %v1189 = vld [vmem:[#allocation5 + $0x28] sm:$0xff]
          %v1190 = vld [vmem:[#allocation5 + $0x30] sm:$0xff]
          %v1191 = vld [vmem:[#allocation5 + $0x38] sm:$0xff]
          %v1192 = vld [vmem:[%s6] sm:$0xff]
          %v1193 = vld [vmem:[%s6 + $0x8] sm:$0xff]
          %v1194 = vld [vmem:[%s6 + $0x10] sm:$0xff]
          %v1195 = vld [vmem:[%s6 + $0x18] sm:$0xff]
          %v1196 = vld [vmem:[%s6 + $0x20] sm:$0xff]
          %v1197 = vld [vmem:[%s6 + $0x28] sm:$0xff]
          %v1198 = vld [vmem:[%s6 + $0x30] sm:$0xff]
          %v1199 = vld [vmem:[%s6 + $0x38] sm:$0xff]
          %1201 = vset.pattern.permute.xlu0 0
          %1202 = vperm.xlu0 %1201, %v1192
          %v1203 = vpop.permute.xlu0 %1202
          %1206 = vset.pattern.permute.xlu0 0
          %1207 = vperm.xlu0 %1206, %v1193
          %v1208 = vpop.permute.xlu0 %1207
          %1211 = vset.pattern.permute.xlu0 0
          %1212 = vperm.xlu0 %1211, %v1194
          %v1213 = vpop.permute.xlu0 %1212
          %1216 = vset.pattern.permute.xlu0 0
          %1217 = vperm.xlu0 %1216, %v1195
          %v1218 = vpop.permute.xlu0 %1217
          %1221 = vset.pattern.permute.xlu0 0
          %1222 = vperm.xlu0 %1221, %v1196
          %v1223 = vpop.permute.xlu0 %1222
          %1226 = vset.pattern.permute.xlu0 0
          %1227 = vperm.xlu0 %1226, %v1197
          %v1228 = vpop.permute.xlu0 %1227
          %1231 = vset.pattern.permute.xlu0 0
          %1232 = vperm.xlu0 %1231, %v1198
          %v1233 = vpop.permute.xlu0 %1232
          %1236 = vset.pattern.permute.xlu0 0
          %1237 = vperm.xlu0 %1236, %v1199
          %v1238 = vpop.permute.xlu0 %1237
          %v1240 = vadd.f32 %v1184, %v1203
          %v1241 = vadd.f32 %v1185, %v1208
          %v1242 = vadd.f32 %v1186, %v1213
          %v1243 = vadd.f32 %v1187, %v1218
          %v1244 = vadd.f32 %v1188, %v1223
          %v1245 = vadd.f32 %v1189, %v1228
          %v1246 = vadd.f32 %v1190, %v1233
          %v1247 = vadd.f32 %v1191, %v1238
          %1248 = vst [vmem:[%s520] sm:$0xff] %v1240
          %1249 = vst [vmem:[%s520 + $0x8] sm:$0xff] %v1241
          %1250 = vst [vmem:[%s520 + $0x10] sm:$0xff] %v1242
          %1251 = vst [vmem:[%s520 + $0x18] sm:$0xff] %v1243
          %1252 = vst [vmem:[%s520 + $0x20] sm:$0xff] %v1244
          %1253 = vst [vmem:[%s520 + $0x28] sm:$0xff] %v1245
          %1254 = vst [vmem:[%s520 + $0x30] sm:$0xff] %v1246
          %1255 = vst [vmem:[%s520 + $0x38] sm:$0xff] %v1247
          %v1256 = vld [vmem:[#allocation4] sm:$0x1]
          %1257 = vst [vmem:[%s526] sm:$0x1] %v1256
        $region143: #{tpu_custom_call.1} parent=118 // pred_fallthru
          _
        %s1258 = sand.u32 %s224, 1
        %s1259 = scalar_lea.sflag [#allocation9], %s1258
        %s1260 = sand.u32 %s224, 1
        %s1261 = smul.addr %s1260, 64
        %s1262 = scalar_lea.vmem [#allocation8], %s1261
        %s1263 = sand.u32 %s252, 1
        %s1264 = scalar_lea.sflag [#allocation11], %s1263
        %s1265 = sand.u32 %s252, 1
        %s1266 = scalar_lea.vmem [#allocation10], %s1265
        // Predicated region
        $region144: #{tpu_custom_call.1} parent=118 // pred_check
          %p1267 = pneg %p234
        $region145: #{tpu_custom_call.1} parent=118 // pred_check_branch
          %1269 = sbr.rel (%p1267) target = $region147
        $region146: #{tpu_custom_call.1} parent=118 // pred_region
          %1271 = vsyncadd %s1259, 0
          %s1272 = smul.addr %s32, 16
          %s1273 = sadd.s32 %s31, %s1272
          %s1274 = smul.addr %s1273, 8
          %s1275 = scalar_lea.hbm %s7, %s1274
          %s1276 = sshll.u32 %s1262, 4
          %s1277 = int_to_ptr.vmem [resolvable:$true] %s1276
          %s1278 = sshll.u32 %s1275, 4
          %s1279 = int_to_ptr.hbm [resolvable:$true] %s1278
          %1284 = dma.vmem_to_hbm [thread:$0]  %s1277, 1024, %s1279, %s1259, 128, 256, 8
        $region147: #{tpu_custom_call.1} parent=118 // pred_fallthru
          _
        // Predicated region
        $region148: #{tpu_custom_call.1} parent=118 // pred_check
          %p1285 = pneg %p262
        $region149: #{tpu_custom_call.1} parent=118 // pred_check_branch
          %1287 = sbr.rel (%p1285) target = $region151
        $region150: #{tpu_custom_call.1} parent=118 // pred_region
          %1289 = vsyncadd %s1264, 0
          %s1290 = smul.addr %s32, 2
          %s1291 = sadd.s32 %s31, %s1290
          %s1292 = scalar_lea.hbm %s8, %s1291
          %s1294 = sshll.u32 %s1266, 4
          %s1295 = int_to_ptr.vmem [resolvable:$true] %s1294
          %s1296 = sshll.u32 %s1292, 4
          %s1297 = int_to_ptr.hbm [resolvable:$true] %s1296
          %1299 = dma.vmem_to_hbm [thread:$0]  %s1295, 16, %s1297, %s1264
        $region151: #{tpu_custom_call.1} parent=118 // pred_fallthru
          _
      $region119: #{tpu_custom_call.1} parent=5 // pred_fallthru
        _
      %p1300 = scmp.le.s32.totalorder 2, %s21
      // Predicated region
      $region152: #{tpu_custom_call.1} parent=5 // pred_check
        %p1301 = pneg %p1300
      $region153: #{tpu_custom_call.1} parent=5 // pred_check_branch
        %1303 = sbr.rel (%p1301) target = $region155
      $region154: #{tpu_custom_call.1} parent=5 // pred_region
        %s1304 = ssub.s32 %s21, 2
        // Predicated region
        $region156: #{tpu_custom_call.1} parent=154 // pred_check
          %p1305 = pneg %p240
        $region157: #{tpu_custom_call.1} parent=154 // pred_check_branch
          %1307 = sbr.rel (%p1305) target = $region159
        $region158: #{tpu_custom_call.1} parent=154 // pred_region
          %s1308 = sand.u32 %s225, 1
          %s1309 = scalar_lea.sflag [#allocation9], %s1308
          %s1310 = sand.u32 %s225, 1
          %s1311 = smul.addr %s1310, 64
          %s1312 = scalar_lea.vmem [#allocation8], %s1311
          %1314 = dma.done %s1309, 1024
        $region159: #{tpu_custom_call.1} parent=154 // pred_fallthru
          _
        // Predicated region
        $region160: #{tpu_custom_call.1} parent=154 // pred_check
          %p1315 = pneg %p268
        $region161: #{tpu_custom_call.1} parent=154 // pred_check_branch
          %1317 = sbr.rel (%p1315) target = $region163
        $region162: #{tpu_custom_call.1} parent=154 // pred_region
          %s1318 = sand.u32 %s253, 1
          %s1319 = scalar_lea.sflag [#allocation11], %s1318
          %s1320 = sand.u32 %s253, 1
          %s1321 = scalar_lea.vmem [#allocation10], %s1320
          %1323 = dma.done %s1319, 16
        $region163: #{tpu_custom_call.1} parent=154 // pred_fallthru
          _
      $region155: #{tpu_custom_call.1} parent=5 // pred_fallthru
        _
    $region6: #{tpu_custom_call.1} parent=1 // loop_footer
      %s25 = sadd.s32 1, %s21
    $region7: #{tpu_custom_call.1} parent=1 // loop_footer_branch
      %20 = sbr.rel target = $region3
    $region8: #{tpu_custom_call.1} parent=1 // loop_exit
      _
    %1324 = vsyncpa [#allocation9], 1
    %s1325 = scalar_lea.sflag [#allocation9], 1
    %1326 = vsyncpa %s1325, 1
    %1327 = vsyncpa [#allocation11], 1
    %s1328 = scalar_lea.sflag [#allocation11], 1
    %1329 = vsyncpa %s1328, 1

</llo_original>
